<compile_context>
chip_gen: v7x
topology: tpu7x:2x2x1
jax: 0.10.0
libtpu: 0.0.40
codegen_flags: <defaults>
</compile_context>

<pallas_src>
import functools

import jax
import jax.numpy as jnp
from jax.experimental import pallas as pl
from jax.experimental.pallas import tpu as pltpu

LANES = 128  # TPU lane width: all kernel I/O is padded to multiples of this.


# ----------------------------- Fused kernel -----------------------------------
def neurallp_fused_kernel(x_ref, wpack_ref, xin_ref, out_ref, *, B, T, H):
    """Single-invocation fused kernel: LSTM + linear head + attention/state mixing.

      x_ref     [B]            int32 entity ids (SMEM) -> in-kernel one-hot
      wpack_ref [9H+8, 128]    packed weights (see _pack_weights for layout)
      xin_ref   [8, 128]       rows 0:B = emb_r, row B = emb_pad  (lanes 0:H)
      out_ref   [B, (T+1)*128] lane slot t<T = w_all[:, t, :] (lane-padded),
                               lane slot T   = final state s   (lane-padded)
    """
    H4 = 4 * H

    # --- carve packed weights out with static slices (zero runtime cost) -------
    w_hh_g = [wpack_ref[g * H:(g + 1) * H, :H] for g in range(4)]        # 4 x [H, H]
    w_ih_g = [wpack_ref[H4 + g * H:H4 + (g + 1) * H, :H] for g in range(4)]
    w_lin = wpack_ref[2 * H4:2 * H4 + H, :]                              # [H, 128] (lane-padded)
    brow = 2 * H4 + H
    b_g = [wpack_ref[brow + g:brow + g + 1, :H] for g in range(4)]       # 4 x [1, H]
    b_lin = wpack_ref[brow + 4:brow + 5, :]                              # [1, 128] (lane-padded)

    emb_r = xin_ref[:B, :H]            # [B, H]  LSTM input for t < T
    emb_pad = xin_ref[B:B + 1, :H]     # [1, H]  LSTM input at t == T

    # --- hoisted input projections (per-gate, lane offset 0; computed once) ----
    gx_r = [jnp.dot(emb_r, w_ih_g[g], preferred_element_type=jnp.float32) + b_g[g]
            for g in range(4)]                                            # 4 x [B, H]
    gx_pad = [jnp.dot(emb_pad, w_ih_g[g], preferred_element_type=jnp.float32) + b_g[g]
              for g in range(4)]                                          # 4 x [1, H]

    # --- dense one-hot start state built from SMEM scalars (x_ori_i) -----------
    row = jax.lax.broadcasted_iota(jnp.int32, (B, LANES), 0)
    lane = jax.lax.broadcasted_iota(jnp.int32, (B, LANES), 1)
    x0 = jnp.zeros((B, LANES), jnp.float32)
    for b in range(B):                                   # B is tiny & static
        x0 = jnp.where((row == b) & (lane == x_ref[b]), 1.0, x0)

    h = jnp.zeros((B, H), jnp.float32)
    c = jnp.zeros((B, H), jnp.float32)
    hs = []                   # LSTM hidden states h_0 .. h_T
    states = [x0]             # dense [B, 128] states (sparse one-hots densified)

    for t in range(T + 1):                               # fully unrolled, T tiny
        # --- LSTM cell: four per-gate dots, every gate at lane offset 0 --------
        gx = gx_r if t < T else gx_pad                   # PyTorch gate order i,f,g,o
        i_g = jax.nn.sigmoid(gx[0] + jnp.dot(h, w_hh_g[0], preferred_element_type=jnp.float32))
        f_g = jax.nn.sigmoid(gx[1] + jnp.dot(h, w_hh_g[1], preferred_element_type=jnp.float32))
        g_g = jnp.tanh(gx[2] + jnp.dot(h, w_hh_g[2], preferred_element_type=jnp.float32))
        o_g = jax.nn.sigmoid(gx[3] + jnp.dot(h, w_hh_g[3], preferred_element_type=jnp.float32))
        c = f_g * c + i_g * g_g
        h = o_g * jnp.tanh(c)
        hs.append(h)

        # --- fused linear head, stored directly as a 128-aligned lane block ----
        if t < T:
            w_t = jnp.dot(h, w_lin, preferred_element_type=jnp.float32) + b_lin  # [B, 128]
            out_ref[:, t * LANES:(t + 1) * LANES] = w_t

        # --- attention over existing states: softmax_j( h_t . h_j ), j <= t ----
        # Each pairwise dot is computed exactly once; softmax runs over exactly
        # the t+1 valid scores (no -inf masking).  At H=32 the per-pair
        # cross-lane reduces are cheap (see review: low priority at this H).
        s_t = [jnp.sum(h * hs[j], axis=-1, keepdims=True) for j in range(t + 1)]  # [B,1] each
        m = s_t[0]
        for j in range(1, t + 1):
            m = jnp.maximum(m, s_t[j])
        e_t = [jnp.exp(sc - m) for sc in s_t]
        denom = e_t[0]
        for j in range(1, t + 1):
            denom = denom + e_t[j]
        # match_att + torch.sparse.sum, densified: attention-weighted state sum.
        acc = e_t[0] * states[0]
        for j in range(1, t + 1):
            acc = acc + e_t[j] * states[j]
        acc = acc * pl.reciprocal(denom, approx=True)    # EUP slot (free), not VPU divide

        # TODO(synk): sparse_matrix_multiply_sp / sparse_matrix_multiply_L_sp /
        # norm_sp are not defined in the reference module source; the
        # knowledge-graph propagation for t < T is left as identity and the
        # attention-mixed state is carried forward directly.
        states.append(acc)

    # sum_sp(states[-1]) densified -> [B, E] (lane-padded), one 128-aligned store
    out_ref[:, T * LANES:(T + 1) * LANES] = states[-1]


# ------------------------------ Weight packing ---------------------------------
def _pack_weights(w_ih, w_hh, b_lstm, w_lin, b_lin, H):
    """Pack all parameters into one 128-lane slab.

    Row layout ([9H + 8, 128], f32):
      rows [0,   4H) : w_hh gate blocks   (gate g at rows g*H:(g+1)*H, lanes 0:H)
      rows [4H,  8H) : w_ih gate blocks   (same layout)
      rows [8H,  9H) : w_lin              (lanes 0:n, zero-padded to 128)
      rows 9H + g    : gate bias g = b_ih_g + b_hh_g   (lanes 0:H)
      row  9H + 4    : b_lin              (lanes 0:n)
      rows 9H+5..9H+7: zero padding (sublane multiple of 8)
    """
    def pad(a, rows):
        return jnp.pad(a.astype(jnp.float32),
                       ((0, rows - a.shape[0]), (0, LANES - a.shape[1])))

    blocks = [pad(w_hh[:, g * H:(g + 1) * H], H) for g in range(4)]
    blocks += [pad(w_ih[:, g * H:(g + 1) * H], H) for g in range(4)]
    blocks += [pad(w_lin, H)]
    blocks += [pad(b_lstm[:, g * H:(g + 1) * H], 1) for g in range(4)]
    blocks += [pad(b_lin, 1)]
    blocks += [jnp.zeros((3, LANES), jnp.float32)]
    return jnp.concatenate(blocks, axis=0)               # [9H + 8, 128]


# --------------------------------- Forward -------------------------------------
@functools.partial(jax.jit, static_argnames=("T", "H", "n_rel", "E"))
def neurallp_forward(wpack, emb, input_x, input_r, *, T, H, n_rel, E):
    """Glue (embedding gather, activation packing) + single fused Pallas kernel."""
    B = input_x.shape[0]

    emb_r = emb[input_r]                                  # [B, H]
    emb_pad = emb[n_rel]                                  # [H]    (embedding of index self.n)
    rows = ((B + 1 + 7) // 8) * 8
    xin = jnp.zeros((rows, LANES), jnp.float32)
    xin = xin.at[:B, :H].set(emb_r)
    xin = xin.at[B, :H].set(emb_pad)

    out = pl.pallas_call(
        functools.partial(neurallp_fused_kernel, B=B, T=T, H=H),
        out_shape=jax.ShapeDtypeStruct((B, (T + 1) * LANES), jnp.float32),
        in_specs=[
            pl.BlockSpec(memory_space=pltpu.MemorySpace.SMEM),   # input_x scalars
            pl.BlockSpec(memory_space=pltpu.MemorySpace.VMEM),   # packed weights
            pl.BlockSpec(memory_space=pltpu.MemorySpace.VMEM),   # packed activations
        ],
        out_specs=pl.BlockSpec(memory_space=pltpu.MemorySpace.VMEM),
        compiler_params=pltpu.CompilerParams(vmem_limit_bytes=32 * 1024 * 1024),
    )(input_x.astype(jnp.int32), wpack, xin)

    w_all = out[:, :T * LANES].reshape(B, T, LANES)[:, :, :n_rel]   # [B, T, n]
    s = out[:, T * LANES:T * LANES + E]                             # [B, E]
    return s, w_all


# ---------------------------------- Model ---------------------------------------
class PallasNeuralLP:
    def __init__(self, n, T, L, E, N, emb_size, key):
        self.T = T
        self.L = L
        self.E = E
        self.N = N
        self.n = n - 1                      # number of relations (as in reference)
        self.r_size = (n - 1) // 2
        self.emb_size = emb_size
        H = emb_size
        assert H % 8 == 0 and H <= LANES, "toy kernel assumes 8 | H <= 128"
        assert self.n <= LANES and E <= LANES, "toy kernel keeps E, n within one lane slot"

        ks = jax.random.split(key, 6)
        s = 1.0 / jnp.sqrt(H)
        # deterministic synthetic parameters (shapes follow the nn.Module __init__)
        emb = jax.random.normal(ks[0], (self.n + 1, H), jnp.float32)            # nn.Embedding
        w_ih = jax.random.uniform(ks[1], (H, 4 * H), jnp.float32, -s, s)        # LSTM W_ih^T
        w_hh = jax.random.uniform(ks[2], (H, 4 * H), jnp.float32, -s, s)        # LSTM W_hh^T
        b_lstm = jax.random.uniform(ks[3], (1, 4 * H), jnp.float32, -s, s)      # b_ih + b_hh
        w_lin = jax.random.uniform(ks[4], (H, self.n), jnp.float32, -s, s)      # Linear W^T
        b_lin = jax.random.uniform(ks[5], (1, self.n), jnp.float32, -s, s)      # Linear b

        self.emb = emb
        # pre-packed once (static per model) -> kernel sees a single weight DMA
        self.wpack = _pack_weights(w_ih, w_hh, b_lstm, w_lin, b_lin, H)

    def forward(self, input_x, input_r):
        return neurallp_forward(self.wpack, self.emb, input_x, input_r,
                                T=self.T, H=self.emb_size, n_rel=self.n, E=self.E)


# ----------------------------------- main ---------------------------------------
if __name__ == "__main__":
    key = jax.random.PRNGKey(0)
    k_param, k_x, k_r = jax.random.split(key, 3)

    # small shapes consistent with the module
    n, T, L, E, N, emb_size = 9, 3, 3, 16, 32, 32
    B = 2

    model = PallasNeuralLP(n, T, L, E, N, emb_size, k_param)
    input_x = jax.random.randint(k_x, (B,), 0, E)        # entity ids
    input_r = jax.random.randint(k_r, (B,), 0, n - 1)    # relation ids

    s, w_all = model.forward(input_x, input_r)
    jax.block_until_ready((s, w_all))
    assert s.shape == (B, E)
    assert w_all.shape == (B, T, n - 1)
    assert bool(jnp.all(jnp.isfinite(s))) and bool(jnp.all(jnp.isfinite(w_all)))
    print("KERNEL_OK")
</pallas_src>

<mosaic_0001>
module attributes {stable_mosaic.version = 11 : i64} {
  func.func @neurallp_fused_kernel(%arg0: memref<2xi32, #tpu.memory_space<smem>>, %arg1: memref<296x128xf32, #tpu.memory_space<vmem>>, %arg2: memref<8x128xf32, #tpu.memory_space<vmem>>, %arg3: memref<2x512xf32, #tpu.memory_space<vmem>>) attributes {dimension_semantics = [], scalar_prefetch = 0 : i64, scratch_operands = 0 : i64, tpu.core_type = #tpu.core_type<tc>} {
    %c0 = arith.constant 0 : index
    %c0_0 = arith.constant 0 : index
    %0 = vector.load %arg1[%c0, %c0_0] : memref<296x128xf32, #tpu.memory_space<vmem>>, vector<32x32xf32>
    %c32 = arith.constant 32 : index
    %c0_1 = arith.constant 0 : index
    %1 = vector.load %arg1[%c32, %c0_1] : memref<296x128xf32, #tpu.memory_space<vmem>>, vector<32x32xf32>
    %c64 = arith.constant 64 : index
    %c0_2 = arith.constant 0 : index
    %2 = vector.load %arg1[%c64, %c0_2] : memref<296x128xf32, #tpu.memory_space<vmem>>, vector<32x32xf32>
    %c96 = arith.constant 96 : index
    %c0_3 = arith.constant 0 : index
    %3 = vector.load %arg1[%c96, %c0_3] : memref<296x128xf32, #tpu.memory_space<vmem>>, vector<32x32xf32>
    %c128 = arith.constant 128 : index
    %c0_4 = arith.constant 0 : index
    %4 = vector.load %arg1[%c128, %c0_4] : memref<296x128xf32, #tpu.memory_space<vmem>>, vector<32x32xf32>
    %c160 = arith.constant 160 : index
    %c0_5 = arith.constant 0 : index
    %5 = vector.load %arg1[%c160, %c0_5] : memref<296x128xf32, #tpu.memory_space<vmem>>, vector<32x32xf32>
    %c192 = arith.constant 192 : index
    %c0_6 = arith.constant 0 : index
    %6 = vector.load %arg1[%c192, %c0_6] : memref<296x128xf32, #tpu.memory_space<vmem>>, vector<32x32xf32>
    %c224 = arith.constant 224 : index
    %c0_7 = arith.constant 0 : index
    %7 = vector.load %arg1[%c224, %c0_7] : memref<296x128xf32, #tpu.memory_space<vmem>>, vector<32x32xf32>
    %c256 = arith.constant 256 : index
    %c0_8 = arith.constant 0 : index
    %8 = vector.load %arg1[%c256, %c0_8] : memref<296x128xf32, #tpu.memory_space<vmem>>, vector<32x128xf32>
    %c288 = arith.constant 288 : index
    %c0_9 = arith.constant 0 : index
    %9 = vector.load %arg1[%c288, %c0_9] : memref<296x128xf32, #tpu.memory_space<vmem>>, vector<1x32xf32>
    %c289 = arith.constant 289 : index
    %c0_10 = arith.constant 0 : index
    %10 = vector.load %arg1[%c289, %c0_10] : memref<296x128xf32, #tpu.memory_space<vmem>>, vector<1x32xf32>
    %c290 = arith.constant 290 : index
    %c0_11 = arith.constant 0 : index
    %11 = vector.load %arg1[%c290, %c0_11] : memref<296x128xf32, #tpu.memory_space<vmem>>, vector<1x32xf32>
    %c291 = arith.constant 291 : index
    %c0_12 = arith.constant 0 : index
    %12 = vector.load %arg1[%c291, %c0_12] : memref<296x128xf32, #tpu.memory_space<vmem>>, vector<1x32xf32>
    %c292 = arith.constant 292 : index
    %c0_13 = arith.constant 0 : index
    %13 = vector.load %arg1[%c292, %c0_13] : memref<296x128xf32, #tpu.memory_space<vmem>>, vector<1x128xf32>
    %c0_14 = arith.constant 0 : index
    %c0_15 = arith.constant 0 : index
    %14 = vector.load %arg2[%c0_14, %c0_15] : memref<8x128xf32, #tpu.memory_space<vmem>>, vector<2x32xf32>
    %c2 = arith.constant 2 : index
    %c0_16 = arith.constant 0 : index
    %15 = vector.load %arg2[%c2, %c0_16] : memref<8x128xf32, #tpu.memory_space<vmem>>, vector<1x32xf32>
    %cst = arith.constant dense<0.000000e+00> : vector<2x32xf32>
    %16 = tpu.matmul %14, %4, %cst {dimension_numbers = #tpu.dot_dimension_numbers<[1], [0], [0], [1], [0, 0, 1, 1], [], []>} : vector<2x32xf32>, vector<32x32xf32>, vector<2x32xf32> -> vector<2x32xf32>
    %17 = vector.broadcast %9 : vector<1x32xf32> to vector<2x32xf32>
    %18 = arith.addf %16, %17 : vector<2x32xf32>
    %cst_17 = arith.constant dense<0.000000e+00> : vector<2x32xf32>
    %19 = tpu.matmul %14, %5, %cst_17 {dimension_numbers = #tpu.dot_dimension_numbers<[1], [0], [0], [1], [0, 0, 1, 1], [], []>} : vector<2x32xf32>, vector<32x32xf32>, vector<2x32xf32> -> vector<2x32xf32>
    %20 = vector.broadcast %10 : vector<1x32xf32> to vector<2x32xf32>
    %21 = arith.addf %19, %20 : vector<2x32xf32>
    %cst_18 = arith.constant dense<0.000000e+00> : vector<2x32xf32>
    %22 = tpu.matmul %14, %6, %cst_18 {dimension_numbers = #tpu.dot_dimension_numbers<[1], [0], [0], [1], [0, 0, 1, 1], [], []>} : vector<2x32xf32>, vector<32x32xf32>, vector<2x32xf32> -> vector<2x32xf32>
    %23 = vector.broadcast %11 : vector<1x32xf32> to vector<2x32xf32>
    %24 = arith.addf %22, %23 : vector<2x32xf32>
    %cst_19 = arith.constant dense<0.000000e+00> : vector<2x32xf32>
    %25 = tpu.matmul %14, %7, %cst_19 {dimension_numbers = #tpu.dot_dimension_numbers<[1], [0], [0], [1], [0, 0, 1, 1], [], []>} : vector<2x32xf32>, vector<32x32xf32>, vector<2x32xf32> -> vector<2x32xf32>
    %26 = vector.broadcast %12 : vector<1x32xf32> to vector<2x32xf32>
    %27 = arith.addf %25, %26 : vector<2x32xf32>
    %cst_20 = arith.constant dense<0.000000e+00> : vector<1x32xf32>
    %28 = tpu.matmul %15, %4, %cst_20 {dimension_numbers = #tpu.dot_dimension_numbers<[1], [0], [0], [1], [0, 0, 1, 1], [], []>} : vector<1x32xf32>, vector<32x32xf32>, vector<1x32xf32> -> vector<1x32xf32>
    %29 = arith.addf %28, %9 : vector<1x32xf32>
    %cst_21 = arith.constant dense<0.000000e+00> : vector<1x32xf32>
    %30 = tpu.matmul %15, %5, %cst_21 {dimension_numbers = #tpu.dot_dimension_numbers<[1], [0], [0], [1], [0, 0, 1, 1], [], []>} : vector<1x32xf32>, vector<32x32xf32>, vector<1x32xf32> -> vector<1x32xf32>
    %31 = arith.addf %30, %10 : vector<1x32xf32>
    %cst_22 = arith.constant dense<0.000000e+00> : vector<1x32xf32>
    %32 = tpu.matmul %15, %6, %cst_22 {dimension_numbers = #tpu.dot_dimension_numbers<[1], [0], [0], [1], [0, 0, 1, 1], [], []>} : vector<1x32xf32>, vector<32x32xf32>, vector<1x32xf32> -> vector<1x32xf32>
    %33 = arith.addf %32, %11 : vector<1x32xf32>
    %cst_23 = arith.constant dense<0.000000e+00> : vector<1x32xf32>
    %34 = tpu.matmul %15, %7, %cst_23 {dimension_numbers = #tpu.dot_dimension_numbers<[1], [0], [0], [1], [0, 0, 1, 1], [], []>} : vector<1x32xf32>, vector<32x32xf32>, vector<1x32xf32> -> vector<1x32xf32>
    %35 = arith.addf %34, %12 : vector<1x32xf32>
    %36 = tpu.iota {dimensions = array<i32: 0>} : vector<2x128xi32>
    %37 = tpu.iota {dimensions = array<i32: 1>} : vector<2x128xi32>
    %cst_24 = arith.constant 0.000000e+00 : f32
    %38 = vector.broadcast %cst_24 : f32 to vector<2x128xf32>
    %c0_i32 = arith.constant 0 : i32
    %39 = vector.broadcast %c0_i32 : i32 to vector<2x128xi32>
    %40 = arith.cmpi eq, %36, %39 : vector<2x128xi32>
    %c0_25 = arith.constant 0 : index
    %41 = memref.load %arg0[%c0_25] : memref<2xi32, #tpu.memory_space<smem>>
    %42 = vector.broadcast %41 : i32 to vector<2x128xi32>
    %43 = arith.cmpi eq, %37, %42 : vector<2x128xi32>
    %44 = arith.andi %40, %43 : vector<2x128xi1>
    %cst_26 = arith.constant 1.000000e+00 : f32
    %45 = vector.broadcast %cst_26 : f32 to vector<2x128xf32>
    %46 = arith.select %44, %45, %38 : vector<2x128xi1>, vector<2x128xf32>
    %c1_i32 = arith.constant 1 : i32
    %47 = vector.broadcast %c1_i32 : i32 to vector<2x128xi32>
    %48 = arith.cmpi eq, %36, %47 : vector<2x128xi32>
    %c1 = arith.constant 1 : index
    %49 = memref.load %arg0[%c1] : memref<2xi32, #tpu.memory_space<smem>>
    %50 = vector.broadcast %49 : i32 to vector<2x128xi32>
    %51 = arith.cmpi eq, %37, %50 : vector<2x128xi32>
    %52 = arith.andi %48, %51 : vector<2x128xi1>
    %cst_27 = arith.constant 1.000000e+00 : f32
    %53 = vector.broadcast %cst_27 : f32 to vector<2x128xf32>
    %54 = arith.select %52, %53, %46 : vector<2x128xi1>, vector<2x128xf32>
    %cst_28 = arith.constant 0.000000e+00 : f32
    %55 = vector.broadcast %cst_28 : f32 to vector<2x32xf32>
    %cst_29 = arith.constant 0.000000e+00 : f32
    %56 = vector.broadcast %cst_29 : f32 to vector<2x32xf32>
    %cst_30 = arith.constant dense<0.000000e+00> : vector<2x32xf32>
    %57 = tpu.matmul %55, %0, %cst_30 {dimension_numbers = #tpu.dot_dimension_numbers<[1], [0], [0], [1], [0, 0, 1, 1], [], []>} : vector<2x32xf32>, vector<32x32xf32>, vector<2x32xf32> -> vector<2x32xf32>
    %58 = arith.addf %18, %57 : vector<2x32xf32>
    %59 = arith.negf %58 : vector<2x32xf32>
    %60 = math.exp %59 : vector<2x32xf32>
    %cst_31 = arith.constant 1.000000e+00 : f32
    %61 = vector.broadcast %cst_31 : f32 to vector<2x32xf32>
    %62 = arith.addf %61, %60 : vector<2x32xf32>
    %63 = arith.divf %61, %62 : vector<2x32xf32>
    %cst_32 = arith.constant dense<0.000000e+00> : vector<2x32xf32>
    %64 = tpu.matmul %55, %1, %cst_32 {dimension_numbers = #tpu.dot_dimension_numbers<[1], [0], [0], [1], [0, 0, 1, 1], [], []>} : vector<2x32xf32>, vector<32x32xf32>, vector<2x32xf32> -> vector<2x32xf32>
    %65 = arith.addf %21, %64 : vector<2x32xf32>
    %66 = arith.negf %65 : vector<2x32xf32>
    %67 = math.exp %66 : vector<2x32xf32>
    %cst_33 = arith.constant 1.000000e+00 : f32
    %68 = vector.broadcast %cst_33 : f32 to vector<2x32xf32>
    %69 = arith.addf %68, %67 : vector<2x32xf32>
    %70 = arith.divf %68, %69 : vector<2x32xf32>
    %cst_34 = arith.constant dense<0.000000e+00> : vector<2x32xf32>
    %71 = tpu.matmul %55, %2, %cst_34 {dimension_numbers = #tpu.dot_dimension_numbers<[1], [0], [0], [1], [0, 0, 1, 1], [], []>} : vector<2x32xf32>, vector<32x32xf32>, vector<2x32xf32> -> vector<2x32xf32>
    %72 = arith.addf %24, %71 : vector<2x32xf32>
    %73 = math.tanh %72 : vector<2x32xf32>
    %cst_35 = arith.constant dense<0.000000e+00> : vector<2x32xf32>
    %74 = tpu.matmul %55, %3, %cst_35 {dimension_numbers = #tpu.dot_dimension_numbers<[1], [0], [0], [1], [0, 0, 1, 1], [], []>} : vector<2x32xf32>, vector<32x32xf32>, vector<2x32xf32> -> vector<2x32xf32>
    %75 = arith.addf %27, %74 : vector<2x32xf32>
    %76 = arith.negf %75 : vector<2x32xf32>
    %77 = math.exp %76 : vector<2x32xf32>
    %cst_36 = arith.constant 1.000000e+00 : f32
    %78 = vector.broadcast %cst_36 : f32 to vector<2x32xf32>
    %79 = arith.addf %78, %77 : vector<2x32xf32>
    %80 = arith.divf %78, %79 : vector<2x32xf32>
    %81 = arith.mulf %70, %56 : vector<2x32xf32>
    %82 = arith.mulf %63, %73 : vector<2x32xf32>
    %83 = arith.addf %81, %82 : vector<2x32xf32>
    %84 = math.tanh %83 : vector<2x32xf32>
    %85 = arith.mulf %80, %84 : vector<2x32xf32>
    %cst_37 = arith.constant dense<0.000000e+00> : vector<2x128xf32>
    %86 = tpu.matmul %85, %8, %cst_37 {dimension_numbers = #tpu.dot_dimension_numbers<[1], [0], [0], [1], [0, 0, 1, 1], [], []>} : vector<2x32xf32>, vector<32x128xf32>, vector<2x128xf32> -> vector<2x128xf32>
    %87 = vector.broadcast %13 : vector<1x128xf32> to vector<2x128xf32>
    %88 = arith.addf %86, %87 : vector<2x128xf32>
    %c0_38 = arith.constant 0 : index
    %c0_39 = arith.constant 0 : index
    %89 = vector.load %arg3[%c0_38, %c0_39] : memref<2x512xf32, #tpu.memory_space<vmem>>, vector<2x128xf32>
    tpu.vector_store %arg3[%c0_38, %c0_39], %88 {strides = array<i32>} : memref<2x512xf32, #tpu.memory_space<vmem>>, vector<2x128xf32>,
    %90 = arith.mulf %85, %85 : vector<2x32xf32>
    %cst_40 = arith.constant dense<0.000000e+00> : vector<2xf32>
    %91 = vector.multi_reduction <add>, %90, %cst_40 [1] : vector<2x32xf32> to vector<2xf32>
    %92 = vector.shape_cast %91 : vector<2xf32> to vector<2x1xf32>
    %93 = arith.subf %92, %92 : vector<2x1xf32>
    %94 = math.exp %93 : vector<2x1xf32>
    %95 = vector.broadcast %94 : vector<2x1xf32> to vector<2x128xf32>
    %96 = arith.mulf %95, %54 : vector<2x128xf32>
    %97 = tpu.reciprocal %94 {approx = true} : vector<2x1xf32> -> vector<2x1xf32>
    %98 = vector.broadcast %97 : vector<2x1xf32> to vector<2x128xf32>
    %99 = arith.mulf %96, %98 : vector<2x128xf32>
    %cst_41 = arith.constant dense<0.000000e+00> : vector<2x32xf32>
    %100 = tpu.matmul %85, %0, %cst_41 {dimension_numbers = #tpu.dot_dimension_numbers<[1], [0], [0], [1], [0, 0, 1, 1], [], []>} : vector<2x32xf32>, vector<32x32xf32>, vector<2x32xf32> -> vector<2x32xf32>
    %101 = arith.addf %18, %100 : vector<2x32xf32>
    %102 = arith.negf %101 : vector<2x32xf32>
    %103 = math.exp %102 : vector<2x32xf32>
    %cst_42 = arith.constant 1.000000e+00 : f32
    %104 = vector.broadcast %cst_42 : f32 to vector<2x32xf32>
    %105 = arith.addf %104, %103 : vector<2x32xf32>
    %106 = arith.divf %104, %105 : vector<2x32xf32>
    %cst_43 = arith.constant dense<0.000000e+00> : vector<2x32xf32>
    %107 = tpu.matmul %85, %1, %cst_43 {dimension_numbers = #tpu.dot_dimension_numbers<[1], [0], [0], [1], [0, 0, 1, 1], [], []>} : vector<2x32xf32>, vector<32x32xf32>, vector<2x32xf32> -> vector<2x32xf32>
    %108 = arith.addf %21, %107 : vector<2x32xf32>
    %109 = arith.negf %108 : vector<2x32xf32>
    %110 = math.exp %109 : vector<2x32xf32>
    %cst_44 = arith.constant 1.000000e+00 : f32
    %111 = vector.broadcast %cst_44 : f32 to vector<2x32xf32>
    %112 = arith.addf %111, %110 : vector<2x32xf32>
    %113 = arith.divf %111, %112 : vector<2x32xf32>
    %cst_45 = arith.constant dense<0.000000e+00> : vector<2x32xf32>
    %114 = tpu.matmul %85, %2, %cst_45 {dimension_numbers = #tpu.dot_dimension_numbers<[1], [0], [0], [1], [0, 0, 1, 1], [], []>} : vector<2x32xf32>, vector<32x32xf32>, vector<2x32xf32> -> vector<2x32xf32>
    %115 = arith.addf %24, %114 : vector<2x32xf32>
    %116 = math.tanh %115 : vector<2x32xf32>
    %cst_46 = arith.constant dense<0.000000e+00> : vector<2x32xf32>
    %117 = tpu.matmul %85, %3, %cst_46 {dimension_numbers = #tpu.dot_dimension_numbers<[1], [0], [0], [1], [0, 0, 1, 1], [], []>} : vector<2x32xf32>, vector<32x32xf32>, vector<2x32xf32> -> vector<2x32xf32>
    %118 = arith.addf %27, %117 : vector<2x32xf32>
    %119 = arith.negf %118 : vector<2x32xf32>
    %120 = math.exp %119 : vector<2x32xf32>
    %cst_47 = arith.constant 1.000000e+00 : f32
    %121 = vector.broadcast %cst_47 : f32 to vector<2x32xf32>
    %122 = arith.addf %121, %120 : vector<2x32xf32>
    %123 = arith.divf %121, %122 : vector<2x32xf32>
    %124 = arith.mulf %113, %83 : vector<2x32xf32>
    %125 = arith.mulf %106, %116 : vector<2x32xf32>
    %126 = arith.addf %124, %125 : vector<2x32xf32>
    %127 = math.tanh %126 : vector<2x32xf32>
    %128 = arith.mulf %123, %127 : vector<2x32xf32>
    %cst_48 = arith.constant dense<0.000000e+00> : vector<2x128xf32>
    %129 = tpu.matmul %128, %8, %cst_48 {dimension_numbers = #tpu.dot_dimension_numbers<[1], [0], [0], [1], [0, 0, 1, 1], [], []>} : vector<2x32xf32>, vector<32x128xf32>, vector<2x128xf32> -> vector<2x128xf32>
    %130 = vector.broadcast %13 : vector<1x128xf32> to vector<2x128xf32>
    %131 = arith.addf %129, %130 : vector<2x128xf32>
    %c0_49 = arith.constant 0 : index
    %c128_50 = arith.constant 128 : index
    %132 = vector.load %arg3[%c0_49, %c128_50] : memref<2x512xf32, #tpu.memory_space<vmem>>, vector<2x128xf32>
    tpu.vector_store %arg3[%c0_49, %c128_50], %131 {strides = array<i32>} : memref<2x512xf32, #tpu.memory_space<vmem>>, vector<2x128xf32>,
    %133 = arith.mulf %128, %85 : vector<2x32xf32>
    %cst_51 = arith.constant dense<0.000000e+00> : vector<2xf32>
    %134 = vector.multi_reduction <add>, %133, %cst_51 [1] : vector<2x32xf32> to vector<2xf32>
    %135 = vector.shape_cast %134 : vector<2xf32> to vector<2x1xf32>
    %136 = arith.mulf %128, %128 : vector<2x32xf32>
    %cst_52 = arith.constant dense<0.000000e+00> : vector<2xf32>
    %137 = vector.multi_reduction <add>, %136, %cst_52 [1] : vector<2x32xf32> to vector<2xf32>
    %138 = vector.shape_cast %137 : vector<2xf32> to vector<2x1xf32>
    %139 = arith.maximumf %135, %138 : vector<2x1xf32>
    %140 = arith.subf %135, %139 : vector<2x1xf32>
    %141 = math.exp %140 : vector<2x1xf32>
    %142 = arith.subf %138, %139 : vector<2x1xf32>
    %143 = math.exp %142 : vector<2x1xf32>
    %144 = arith.addf %141, %143 : vector<2x1xf32>
    %145 = vector.broadcast %141 : vector<2x1xf32> to vector<2x128xf32>
    %146 = arith.mulf %145, %54 : vector<2x128xf32>
    %147 = vector.broadcast %143 : vector<2x1xf32> to vector<2x128xf32>
    %148 = arith.mulf %147, %99 : vector<2x128xf32>
    %149 = arith.addf %146, %148 : vector<2x128xf32>
    %150 = tpu.reciprocal %144 {approx = true} : vector<2x1xf32> -> vector<2x1xf32>
    %151 = vector.broadcast %150 : vector<2x1xf32> to vector<2x128xf32>
    %152 = arith.mulf %149, %151 : vector<2x128xf32>
    %cst_53 = arith.constant dense<0.000000e+00> : vector<2x32xf32>
    %153 = tpu.matmul %128, %0, %cst_53 {dimension_numbers = #tpu.dot_dimension_numbers<[1], [0], [0], [1], [0, 0, 1, 1], [], []>} : vector<2x32xf32>, vector<32x32xf32>, vector<2x32xf32> -> vector<2x32xf32>
    %154 = arith.addf %18, %153 : vector<2x32xf32>
    %155 = arith.negf %154 : vector<2x32xf32>
    %156 = math.exp %155 : vector<2x32xf32>
    %cst_54 = arith.constant 1.000000e+00 : f32
    %157 = vector.broadcast %cst_54 : f32 to vector<2x32xf32>
    %158 = arith.addf %157, %156 : vector<2x32xf32>
    %159 = arith.divf %157, %158 : vector<2x32xf32>
    %cst_55 = arith.constant dense<0.000000e+00> : vector<2x32xf32>
    %160 = tpu.matmul %128, %1, %cst_55 {dimension_numbers = #tpu.dot_dimension_numbers<[1], [0], [0], [1], [0, 0, 1, 1], [], []>} : vector<2x32xf32>, vector<32x32xf32>, vector<2x32xf32> -> vector<2x32xf32>
    %161 = arith.addf %21, %160 : vector<2x32xf32>
    %162 = arith.negf %161 : vector<2x32xf32>
    %163 = math.exp %162 : vector<2x32xf32>
    %cst_56 = arith.constant 1.000000e+00 : f32
    %164 = vector.broadcast %cst_56 : f32 to vector<2x32xf32>
    %165 = arith.addf %164, %163 : vector<2x32xf32>
    %166 = arith.divf %164, %165 : vector<2x32xf32>
    %cst_57 = arith.constant dense<0.000000e+00> : vector<2x32xf32>
    %167 = tpu.matmul %128, %2, %cst_57 {dimension_numbers = #tpu.dot_dimension_numbers<[1], [0], [0], [1], [0, 0, 1, 1], [], []>} : vector<2x32xf32>, vector<32x32xf32>, vector<2x32xf32> -> vector<2x32xf32>
    %168 = arith.addf %24, %167 : vector<2x32xf32>
    %169 = math.tanh %168 : vector<2x32xf32>
    %cst_58 = arith.constant dense<0.000000e+00> : vector<2x32xf32>
    %170 = tpu.matmul %128, %3, %cst_58 {dimension_numbers = #tpu.dot_dimension_numbers<[1], [0], [0], [1], [0, 0, 1, 1], [], []>} : vector<2x32xf32>, vector<32x32xf32>, vector<2x32xf32> -> vector<2x32xf32>
    %171 = arith.addf %27, %170 : vector<2x32xf32>
    %172 = arith.negf %171 : vector<2x32xf32>
    %173 = math.exp %172 : vector<2x32xf32>
    %cst_59 = arith.constant 1.000000e+00 : f32
    %174 = vector.broadcast %cst_59 : f32 to vector<2x32xf32>
    %175 = arith.addf %174, %173 : vector<2x32xf32>
    %176 = arith.divf %174, %175 : vector<2x32xf32>
    %177 = arith.mulf %166, %126 : vector<2x32xf32>
    %178 = arith.mulf %159, %169 : vector<2x32xf32>
    %179 = arith.addf %177, %178 : vector<2x32xf32>
    %180 = math.tanh %179 : vector<2x32xf32>
    %181 = arith.mulf %176, %180 : vector<2x32xf32>
    %cst_60 = arith.constant dense<0.000000e+00> : vector<2x128xf32>
    %182 = tpu.matmul %181, %8, %cst_60 {dimension_numbers = #tpu.dot_dimension_numbers<[1], [0], [0], [1], [0, 0, 1, 1], [], []>} : vector<2x32xf32>, vector<32x128xf32>, vector<2x128xf32> -> vector<2x128xf32>
    %183 = vector.broadcast %13 : vector<1x128xf32> to vector<2x128xf32>
    %184 = arith.addf %182, %183 : vector<2x128xf32>
    %c0_61 = arith.constant 0 : index
    %c256_62 = arith.constant 256 : index
    %185 = vector.load %arg3[%c0_61, %c256_62] : memref<2x512xf32, #tpu.memory_space<vmem>>, vector<2x128xf32>
    tpu.vector_store %arg3[%c0_61, %c256_62], %184 {strides = array<i32>} : memref<2x512xf32, #tpu.memory_space<vmem>>, vector<2x128xf32>,
    %186 = arith.mulf %181, %85 : vector<2x32xf32>
    %cst_63 = arith.constant dense<0.000000e+00> : vector<2xf32>
    %187 = vector.multi_reduction <add>, %186, %cst_63 [1] : vector<2x32xf32> to vector<2xf32>
    %188 = vector.shape_cast %187 : vector<2xf32> to vector<2x1xf32>
    %189 = arith.mulf %181, %128 : vector<2x32xf32>
    %cst_64 = arith.constant dense<0.000000e+00> : vector<2xf32>
    %190 = vector.multi_reduction <add>, %189, %cst_64 [1] : vector<2x32xf32> to vector<2xf32>
    %191 = vector.shape_cast %190 : vector<2xf32> to vector<2x1xf32>
    %192 = arith.mulf %181, %181 : vector<2x32xf32>
    %cst_65 = arith.constant dense<0.000000e+00> : vector<2xf32>
    %193 = vector.multi_reduction <add>, %192, %cst_65 [1] : vector<2x32xf32> to vector<2xf32>
    %194 = vector.shape_cast %193 : vector<2xf32> to vector<2x1xf32>
    %195 = arith.maximumf %188, %191 : vector<2x1xf32>
    %196 = arith.maximumf %195, %194 : vector<2x1xf32>
    %197 = arith.subf %188, %196 : vector<2x1xf32>
    %198 = math.exp %197 : vector<2x1xf32>
    %199 = arith.subf %191, %196 : vector<2x1xf32>
    %200 = math.exp %199 : vector<2x1xf32>
    %201 = arith.subf %194, %196 : vector<2x1xf32>
    %202 = math.exp %201 : vector<2x1xf32>
    %203 = arith.addf %198, %200 : vector<2x1xf32>
    %204 = arith.addf %203, %202 : vector<2x1xf32>
    %205 = vector.broadcast %198 : vector<2x1xf32> to vector<2x128xf32>
    %206 = arith.mulf %205, %54 : vector<2x128xf32>
    %207 = vector.broadcast %200 : vector<2x1xf32> to vector<2x128xf32>
    %208 = arith.mulf %207, %99 : vector<2x128xf32>
    %209 = arith.addf %206, %208 : vector<2x128xf32>
    %210 = vector.broadcast %202 : vector<2x1xf32> to vector<2x128xf32>
    %211 = arith.mulf %210, %152 : vector<2x128xf32>
    %212 = arith.addf %209, %211 : vector<2x128xf32>
    %213 = tpu.reciprocal %204 {approx = true} : vector<2x1xf32> -> vector<2x1xf32>
    %214 = vector.broadcast %213 : vector<2x1xf32> to vector<2x128xf32>
    %215 = arith.mulf %212, %214 : vector<2x128xf32>
    %cst_66 = arith.constant dense<0.000000e+00> : vector<2x32xf32>
    %216 = tpu.matmul %181, %0, %cst_66 {dimension_numbers = #tpu.dot_dimension_numbers<[1], [0], [0], [1], [0, 0, 1, 1], [], []>} : vector<2x32xf32>, vector<32x32xf32>, vector<2x32xf32> -> vector<2x32xf32>
    %217 = vector.broadcast %29 : vector<1x32xf32> to vector<2x32xf32>
    %218 = arith.addf %217, %216 : vector<2x32xf32>
    %219 = arith.negf %218 : vector<2x32xf32>
    %220 = math.exp %219 : vector<2x32xf32>
    %cst_67 = arith.constant 1.000000e+00 : f32
    %221 = vector.broadcast %cst_67 : f32 to vector<2x32xf32>
    %222 = arith.addf %221, %220 : vector<2x32xf32>
    %223 = arith.divf %221, %222 : vector<2x32xf32>
    %cst_68 = arith.constant dense<0.000000e+00> : vector<2x32xf32>
    %224 = tpu.matmul %181, %1, %cst_68 {dimension_numbers = #tpu.dot_dimension_numbers<[1], [0], [0], [1], [0, 0, 1, 1], [], []>} : vector<2x32xf32>, vector<32x32xf32>, vector<2x32xf32> -> vector<2x32xf32>
    %225 = vector.broadcast %31 : vector<1x32xf32> to vector<2x32xf32>
    %226 = arith.addf %225, %224 : vector<2x32xf32>
    %227 = arith.negf %226 : vector<2x32xf32>
    %228 = math.exp %227 : vector<2x32xf32>
    %cst_69 = arith.constant 1.000000e+00 : f32
    %229 = vector.broadcast %cst_69 : f32 to vector<2x32xf32>
    %230 = arith.addf %229, %228 : vector<2x32xf32>
    %231 = arith.divf %229, %230 : vector<2x32xf32>
    %cst_70 = arith.constant dense<0.000000e+00> : vector<2x32xf32>
    %232 = tpu.matmul %181, %2, %cst_70 {dimension_numbers = #tpu.dot_dimension_numbers<[1], [0], [0], [1], [0, 0, 1, 1], [], []>} : vector<2x32xf32>, vector<32x32xf32>, vector<2x32xf32> -> vector<2x32xf32>
    %233 = vector.broadcast %33 : vector<1x32xf32> to vector<2x32xf32>
    %234 = arith.addf %233, %232 : vector<2x32xf32>
    %235 = math.tanh %234 : vector<2x32xf32>
    %cst_71 = arith.constant dense<0.000000e+00> : vector<2x32xf32>
    %236 = tpu.matmul %181, %3, %cst_71 {dimension_numbers = #tpu.dot_dimension_numbers<[1], [0], [0], [1], [0, 0, 1, 1], [], []>} : vector<2x32xf32>, vector<32x32xf32>, vector<2x32xf32> -> vector<2x32xf32>
    %237 = vector.broadcast %35 : vector<1x32xf32> to vector<2x32xf32>
    %238 = arith.addf %237, %236 : vector<2x32xf32>
    %239 = arith.negf %238 : vector<2x32xf32>
    %240 = math.exp %239 : vector<2x32xf32>
    %cst_72 = arith.constant 1.000000e+00 : f32
    %241 = vector.broadcast %cst_72 : f32 to vector<2x32xf32>
    %242 = arith.addf %241, %240 : vector<2x32xf32>
    %243 = arith.divf %241, %242 : vector<2x32xf32>
    %244 = arith.mulf %231, %179 : vector<2x32xf32>
    %245 = arith.mulf %223, %235 : vector<2x32xf32>
    %246 = arith.addf %244, %245 : vector<2x32xf32>
    %247 = math.tanh %246 : vector<2x32xf32>
    %248 = arith.mulf %243, %247 : vector<2x32xf32>
    %249 = arith.mulf %248, %85 : vector<2x32xf32>
    %cst_73 = arith.constant dense<0.000000e+00> : vector<2xf32>
    %250 = vector.multi_reduction <add>, %249, %cst_73 [1] : vector<2x32xf32> to vector<2xf32>
    %251 = vector.shape_cast %250 : vector<2xf32> to vector<2x1xf32>
    %252 = arith.mulf %248, %128 : vector<2x32xf32>
    %cst_74 = arith.constant dense<0.000000e+00> : vector<2xf32>
    %253 = vector.multi_reduction <add>, %252, %cst_74 [1] : vector<2x32xf32> to vector<2xf32>
    %254 = vector.shape_cast %253 : vector<2xf32> to vector<2x1xf32>
    %255 = arith.mulf %248, %181 : vector<2x32xf32>
    %cst_75 = arith.constant dense<0.000000e+00> : vector<2xf32>
    %256 = vector.multi_reduction <add>, %255, %cst_75 [1] : vector<2x32xf32> to vector<2xf32>
    %257 = vector.shape_cast %256 : vector<2xf32> to vector<2x1xf32>
    %258 = arith.mulf %248, %248 : vector<2x32xf32>
    %cst_76 = arith.constant dense<0.000000e+00> : vector<2xf32>
    %259 = vector.multi_reduction <add>, %258, %cst_76 [1] : vector<2x32xf32> to vector<2xf32>
    %260 = vector.shape_cast %259 : vector<2xf32> to vector<2x1xf32>
    %261 = arith.maximumf %251, %254 : vector<2x1xf32>
    %262 = arith.maximumf %261, %257 : vector<2x1xf32>
    %263 = arith.maximumf %262, %260 : vector<2x1xf32>
    %264 = arith.subf %251, %263 : vector<2x1xf32>
    %265 = math.exp %264 : vector<2x1xf32>
    %266 = arith.subf %254, %263 : vector<2x1xf32>
    %267 = math.exp %266 : vector<2x1xf32>
    %268 = arith.subf %257, %263 : vector<2x1xf32>
    %269 = math.exp %268 : vector<2x1xf32>
    %270 = arith.subf %260, %263 : vector<2x1xf32>
    %271 = math.exp %270 : vector<2x1xf32>
    %272 = arith.addf %265, %267 : vector<2x1xf32>
    %273 = arith.addf %272, %269 : vector<2x1xf32>
    %274 = arith.addf %273, %271 : vector<2x1xf32>
    %275 = vector.broadcast %265 : vector<2x1xf32> to vector<2x128xf32>
    %276 = arith.mulf %275, %54 : vector<2x128xf32>
    %277 = vector.broadcast %267 : vector<2x1xf32> to vector<2x128xf32>
    %278 = arith.mulf %277, %99 : vector<2x128xf32>
    %279 = arith.addf %276, %278 : vector<2x128xf32>
    %280 = vector.broadcast %269 : vector<2x1xf32> to vector<2x128xf32>
    %281 = arith.mulf %280, %152 : vector<2x128xf32>
    %282 = arith.addf %279, %281 : vector<2x128xf32>
    %283 = vector.broadcast %271 : vector<2x1xf32> to vector<2x128xf32>
    %284 = arith.mulf %283, %215 : vector<2x128xf32>
    %285 = arith.addf %282, %284 : vector<2x128xf32>
    %286 = tpu.reciprocal %274 {approx = true} : vector<2x1xf32> -> vector<2x1xf32>
    %287 = vector.broadcast %286 : vector<2x1xf32> to vector<2x128xf32>
    %288 = arith.mulf %285, %287 : vector<2x128xf32>
    %c0_77 = arith.constant 0 : index
    %c384 = arith.constant 384 : index
    %289 = vector.load %arg3[%c0_77, %c384] : memref<2x512xf32, #tpu.memory_space<vmem>>, vector<2x128xf32>
    tpu.vector_store %arg3[%c0_77, %c384], %288 {strides = array<i32>} : memref<2x512xf32, #tpu.memory_space<vmem>>, vector<2x128xf32>,
    return
  }
}

</mosaic_0001>

<llo_original>
// kernel: neurallp_forward.1
$region0: #{neurallp_forward.1}
  #allocation0 [shape = 'u32[]', space=smem, size = 0x4, offset = 0x4, fixed_abs, tag = 'smem constant byte address 0x4 - core index']
  #allocation1 [shape = 'u32[144,128]{1,0:T(1,128)}', space=vmem, size = 0x12000, scoped, tag = 'internal scratch']
  %s0 = inlined_call_operand.vmem [shape: s32[2], index: 0, kind: input, shape index: {}]
  %s1 = inlined_call_operand.hbm [shape: f32[296,128], index: 1, kind: input, shape index: {}]
  %s2 = inlined_call_operand.vmem [shape: f32[8,128], index: 2, kind: input, shape index: {}]
  %s3 = inlined_call_operand.vmem [shape: f32[2,512], index: 3, kind: output, shape index: {}]
  %s4 = sld [smem:[#allocation0]]
  $region30: #{neurallp_forward.1} parent=0
    _
  %s6 = ssub.s32 1, %s4
  %s7 = scalar_select 0, %s6, %s4
  $region1: #{neurallp_forward.1} parent=0
    #allocation2 [shape = 'u8[512]{0}', space=smem, size = 0x200, scoped, tag = 'input window, operand 0, single buffered']
    #allocation3 [shape = 's32[1]{0}', space=sflag, size = 0x4, scoped, tag = 'scoped memory for neurallp_forward.1']
    #allocation4 [shape = 's32[1]{0}', space=sflag, size = 0x4, scoped, tag = 'scoped memory for neurallp_forward.1']
    #allocation5 [shape = 'u8[151552]{0}', space=vmem, size = 0x25000, scoped, tag = 'input window, operand 1, single buffered']
    %8 = vsyncpa [#allocation4], 0
    %9 = vsyncpa [#allocation3], 0
    // Predicated region
    $region2: #{neurallp_forward.1} parent=1 // pred_check
      _
    $region3: #{neurallp_forward.1} parent=1 // pred_check_branch
      %11 = sbr.rel (0) target = $region5
    $region4: #{neurallp_forward.1} parent=1 // pred_region
      %s13 = ssub.s32 16, 16
      %14 = vsyncadd [#allocation4], %s13
      %s16 = sshll.u32 %s0, 4
      %s17 = int_to_ptr.vmem [resolvable:$true] %s16
      %19 = dma.vmem_to_smem %s17, 16, [#allocation2], [#allocation4]
    $region5: #{neurallp_forward.1} parent=1 // pred_fallthru
      _
    // Predicated region
    $region6: #{neurallp_forward.1} parent=1 // pred_check
      _
    $region7: #{neurallp_forward.1} parent=1 // pred_check_branch
      %21 = sbr.rel (0) target = $region9
    $region8: #{neurallp_forward.1} parent=1 // pred_region
      %s23 = ssub.s32 4736, 4736
      %24 = vsyncadd [#allocation3], %s23
      %s25 = sshll.u32 [#allocation5], 4
      %s26 = int_to_ptr.vmem [resolvable:$true] %s25
      %31 = dma.hbm_to_vmem [thread:$0]  %s1, 4736, %s26, [#allocation3], 128, 128, 8
    $region9: #{neurallp_forward.1} parent=1 // pred_fallthru
      _
    // Predicated region
    $region10: #{neurallp_forward.1} parent=1 // pred_check
      _
    $region11: #{neurallp_forward.1} parent=1 // pred_check_branch
      %33 = sbr.rel (0) target = $region13
    $region12: #{neurallp_forward.1} parent=1 // pred_region
      _
    $region13: #{neurallp_forward.1} parent=1 // pred_fallthru
      _
    // Predicated region
    $region14: #{neurallp_forward.1} parent=1 // pred_check
      _
    $region15: #{neurallp_forward.1} parent=1 // pred_check_branch
      %35 = sbr.rel (0) target = $region17
    $region16: #{neurallp_forward.1} parent=1 // pred_region
      %36 = dma.done [#allocation4], 16
    $region17: #{neurallp_forward.1} parent=1 // pred_fallthru
      _
    // Predicated region
    $region18: #{neurallp_forward.1} parent=1 // pred_check
      _
    $region19: #{neurallp_forward.1} parent=1 // pred_check_branch
      %38 = sbr.rel (0) target = $region21
    $region20: #{neurallp_forward.1} parent=1 // pred_region
      %39 = dma.done [#allocation3], 4736
    $region21: #{neurallp_forward.1} parent=1 // pred_fallthru
      _
    %40 = sfence
    %v41 = vld [vmem:[#allocation5] sm:$0xff]
    %v42 = vld [vmem:[#allocation5 + $0x8] sm:$0xff]
    %v43 = vld [vmem:[#allocation5 + $0x10] sm:$0xff]
    %v44 = vld [vmem:[#allocation5 + $0x18] sm:$0xff]
    %v45 = vld [vmem:[#allocation5 + $0x20] sm:$0xff]
    %v46 = vld [vmem:[#allocation5 + $0x28] sm:$0xff]
    %v47 = vld [vmem:[#allocation5 + $0x30] sm:$0xff]
    %v48 = vld [vmem:[#allocation5 + $0x38] sm:$0xff]
    %v49 = vld [vmem:[#allocation5 + $0x40] sm:$0xff]
    %v50 = vld [vmem:[#allocation5 + $0x48] sm:$0xff]
    %v51 = vld [vmem:[#allocation5 + $0x50] sm:$0xff]
    %v52 = vld [vmem:[#allocation5 + $0x58] sm:$0xff]
    %v53 = vld [vmem:[#allocation5 + $0x60] sm:$0xff]
    %v54 = vld [vmem:[#allocation5 + $0x68] sm:$0xff]
    %v55 = vld [vmem:[#allocation5 + $0x70] sm:$0xff]
    %v56 = vld [vmem:[#allocation5 + $0x78] sm:$0xff]
    %v57 = vld [vmem:[#allocation5 + $0x80] sm:$0xff]
    %v58 = vld [vmem:[#allocation5 + $0x88] sm:$0xff]
    %v59 = vld [vmem:[#allocation5 + $0x90] sm:$0xff]
    %v60 = vld [vmem:[#allocation5 + $0x98] sm:$0xff]
    %v61 = vld [vmem:[#allocation5 + $0xa0] sm:$0xff]
    %v62 = vld [vmem:[#allocation5 + $0xa8] sm:$0xff]
    %v63 = vld [vmem:[#allocation5 + $0xb0] sm:$0xff]
    %v64 = vld [vmem:[#allocation5 + $0xb8] sm:$0xff]
    %v65 = vld [vmem:[#allocation5 + $0xc0] sm:$0xff]
    %v66 = vld [vmem:[#allocation5 + $0xc8] sm:$0xff]
    %v67 = vld [vmem:[#allocation5 + $0xd0] sm:$0xff]
    %v68 = vld [vmem:[#allocation5 + $0xd8] sm:$0xff]
    %v69 = vld [vmem:[#allocation5 + $0xe0] sm:$0xff]
    %v70 = vld [vmem:[#allocation5 + $0xe8] sm:$0xff]
    %v71 = vld [vmem:[#allocation5 + $0xf0] sm:$0xff]
    %v72 = vld [vmem:[#allocation5 + $0xf8] sm:$0xff]
    %v73 = vld [vmem:[#allocation5 + $0x100] sm:$0xff]
    %v74 = vld [vmem:[#allocation5 + $0x108] sm:$0xff]
    %v75 = vld [vmem:[#allocation5 + $0x110] sm:$0xff]
    %v76 = vld [vmem:[#allocation5 + $0x118] sm:$0xff]
    %v77 = vld [vmem:[#allocation5 + $0x120] sm:$0x1]
    %v78 = vld [vmem:[#allocation5 + $0x121] sm:$0x1]
    %v79 = vld [vmem:[#allocation5 + $0x122] sm:$0x1]
    %v80 = vld [vmem:[#allocation5 + $0x123] sm:$0x1]
    %v81 = vld [vmem:[#allocation5 + $0x124] sm:$0x1]
    %v82 = vld [vmem:[%s2] sm:$0x3]
    %v83 = vld [vmem:[%s2 + $0x2] sm:$0x1]
    %v84 = vlaneseq
    %v85 = vshrl.u32 %v84, 7
    %v86 = vsub.s32 0, %v85
    %v87 = vrot.slane %v77, %v86
    %vm88 = vcmask 261120
    %v90 = vsel %vm88, %v82, 0
    %92 = vmatprep.subr.mxu0 0.0
    %93 = vmatpush1.msra.mxu0 %v57
    %94 = vmatprep.subr.mxu0 0.0
    %95 = vmatpush1.msra.mxu0 %v58
    %96 = vmatprep.subr.mxu0 0.0
    %97 = vmatpush1.msra.mxu0 %v59
    %98 = vmatprep.subr.mxu0 0.0
    %99 = vmatpush1.msra.mxu0 %v60
    %100 = vmatprep.subr.mxu0 0.0
    %101 = vmatpush1.msra.mxu0 0.0
    %102 = vmatprep.subr.mxu0 0.0
    %103 = vmatpush1.msra.mxu0 0.0
    %104 = vmatprep.subr.mxu0 0.0
    %105 = vmatpush1.msra.mxu0 0.0
    %106 = vmatprep.subr.mxu0 0.0
    %107 = vmatpush1.msra.mxu0 0.0
    %108 = vmatprep.subr.mxu0 0.0
    %109 = vmatpush1.msra.mxu0 0.0
    %110 = vmatprep.subr.mxu0 0.0
    %111 = vmatpush1.msra.mxu0 0.0
    %112 = vmatprep.subr.mxu0 0.0
    %113 = vmatpush1.msra.mxu0 0.0
    %114 = vmatprep.subr.mxu0 0.0
    %115 = vmatpush1.msra.mxu0 0.0
    %116 = vmatprep.subr.mxu0 0.0
    %117 = vmatpush1.msra.mxu0 0.0
    %118 = vmatprep.subr.mxu0 0.0
    %119 = vmatpush1.msra.mxu0 0.0
    %120 = vmatprep.subr.mxu0 0.0
    %121 = vmatpush1.msra.mxu0 0.0
    %122 = vmatprep.subr.mxu0 0.0
    %123 = vmatpush1.msra.mxu0 0.0
    %124 = vmatprep.subr.mxu0 0.0
    %125 = vmatpush1.msra.mxu0 0.0
    %126 = vmatprep.subr.mxu0 0.0
    %127 = vmatpush1.msra.mxu0 0.0
    %128 = vmatprep.subr.mxu0 0.0
    %129 = vmatpush1.msra.mxu0 0.0
    %130 = vmatprep.subr.mxu0 0.0
    %131 = vmatpush1.msra.mxu0 0.0
    %132 = vmatprep.subr.mxu0 0.0
    %133 = vmatpush1.msra.mxu0 0.0
    %134 = vmatprep.subr.mxu0 0.0
    %135 = vmatpush1.msra.mxu0 0.0
    %136 = vmatprep.subr.mxu0 0.0
    %137 = vmatpush1.msra.mxu0 0.0
    %138 = vmatprep.subr.mxu0 0.0
    %139 = vmatpush1.msra.mxu0 0.0
    %140 = vmatprep.subr.mxu0 0.0
    %141 = vmatpush1.msra.mxu0 0.0
    %142 = vmatprep.subr.mxu0 0.0
    %143 = vmatpush1.msra.mxu0 0.0
    %144 = vmatprep.subr.mxu0 0.0
    %145 = vmatpush1.msra.mxu0 0.0
    %146 = vmatprep.subr.mxu0 0.0
    %147 = vmatpush1.msra.mxu0 0.0
    %148 = vmatprep.subr.mxu0 0.0
    %149 = vmatpush1.msra.mxu0 0.0
    %150 = vmatprep.subr.mxu0 0.0
    %151 = vmatpush1.msra.mxu0 0.0
    %152 = vmatprep.subr.mxu0 0.0
    %153 = vmatpush1.msra.mxu0 0.0
    %154 = vmatprep.subr.mxu0 0.0
    %155 = vmatpush1.msra.mxu0 0.0
    %156 = vmatprep.mubr.f32.mxu0 0.0
    %157 = vmatmul.mubr.f32.gmra.mrb[0].mxu0 %v90
    %v158 = vpop.f32.mrb[0].mxu0
    %v159 = vadd.f32 %v87, %v158
    %v160 = vpop.f32.mrb[0].mxu0
    %161 = vdwg.mxu0
    %v162 = vlaneseq
    %v163 = vshrl.u32 %v162, 7
    %v164 = vsub.s32 0, %v163
    %v165 = vrot.slane %v78, %v164
    %166 = vmatprep.subr.mxu0 0.0
    %167 = vmatpush1.msra.mxu0 %v61
    %168 = vmatprep.subr.mxu0 0.0
    %169 = vmatpush1.msra.mxu0 %v62
    %170 = vmatprep.subr.mxu0 0.0
    %171 = vmatpush1.msra.mxu0 %v63
    %172 = vmatprep.subr.mxu0 0.0
    %173 = vmatpush1.msra.mxu0 %v64
    %174 = vmatprep.subr.mxu0 0.0
    %175 = vmatpush1.msra.mxu0 0.0
    %176 = vmatprep.subr.mxu0 0.0
    %177 = vmatpush1.msra.mxu0 0.0
    %178 = vmatprep.subr.mxu0 0.0
    %179 = vmatpush1.msra.mxu0 0.0
    %180 = vmatprep.subr.mxu0 0.0
    %181 = vmatpush1.msra.mxu0 0.0
    %182 = vmatprep.subr.mxu0 0.0
    %183 = vmatpush1.msra.mxu0 0.0
    %184 = vmatprep.subr.mxu0 0.0
    %185 = vmatpush1.msra.mxu0 0.0
    %186 = vmatprep.subr.mxu0 0.0
    %187 = vmatpush1.msra.mxu0 0.0
    %188 = vmatprep.subr.mxu0 0.0
    %189 = vmatpush1.msra.mxu0 0.0
    %190 = vmatprep.subr.mxu0 0.0
    %191 = vmatpush1.msra.mxu0 0.0
    %192 = vmatprep.subr.mxu0 0.0
    %193 = vmatpush1.msra.mxu0 0.0
    %194 = vmatprep.subr.mxu0 0.0
    %195 = vmatpush1.msra.mxu0 0.0
    %196 = vmatprep.subr.mxu0 0.0
    %197 = vmatpush1.msra.mxu0 0.0
    %198 = vmatprep.subr.mxu0 0.0
    %199 = vmatpush1.msra.mxu0 0.0
    %200 = vmatprep.subr.mxu0 0.0
    %201 = vmatpush1.msra.mxu0 0.0
    %202 = vmatprep.subr.mxu0 0.0
    %203 = vmatpush1.msra.mxu0 0.0
    %204 = vmatprep.subr.mxu0 0.0
    %205 = vmatpush1.msra.mxu0 0.0
    %206 = vmatprep.subr.mxu0 0.0
    %207 = vmatpush1.msra.mxu0 0.0
    %208 = vmatprep.subr.mxu0 0.0
    %209 = vmatpush1.msra.mxu0 0.0
    %210 = vmatprep.subr.mxu0 0.0
    %211 = vmatpush1.msra.mxu0 0.0
    %212 = vmatprep.subr.mxu0 0.0
    %213 = vmatpush1.msra.mxu0 0.0
    %214 = vmatprep.subr.mxu0 0.0
    %215 = vmatpush1.msra.mxu0 0.0
    %216 = vmatprep.subr.mxu0 0.0
    %217 = vmatpush1.msra.mxu0 0.0
    %218 = vmatprep.subr.mxu0 0.0
    %219 = vmatpush1.msra.mxu0 0.0
    %220 = vmatprep.subr.mxu0 0.0
    %221 = vmatpush1.msra.mxu0 0.0
    %222 = vmatprep.subr.mxu0 0.0
    %223 = vmatpush1.msra.mxu0 0.0
    %224 = vmatprep.subr.mxu0 0.0
    %225 = vmatpush1.msra.mxu0 0.0
    %226 = vmatprep.subr.mxu0 0.0
    %227 = vmatpush1.msra.mxu0 0.0
    %228 = vmatprep.subr.mxu0 0.0
    %229 = vmatpush1.msra.mxu0 0.0
    %230 = vmatprep.mubr.f32.mxu0 0.0
    %231 = vmatmul.mubr.f32.gmra.mrb[0].mxu0 %v90
    %v232 = vpop.f32.mrb[0].mxu0
    %v233 = vadd.f32 %v165, %v232
    %v234 = vpop.f32.mrb[0].mxu0
    %235 = vdwg.mxu0
    %v236 = vlaneseq
    %v237 = vshrl.u32 %v236, 7
    %v238 = vsub.s32 0, %v237
    %v239 = vrot.slane %v79, %v238
    %240 = vmatprep.subr.mxu0 0.0
    %241 = vmatpush1.msra.mxu0 %v65
    %242 = vmatprep.subr.mxu0 0.0
    %243 = vmatpush1.msra.mxu0 %v66
    %244 = vmatprep.subr.mxu0 0.0
    %245 = vmatpush1.msra.mxu0 %v67
    %246 = vmatprep.subr.mxu0 0.0
    %247 = vmatpush1.msra.mxu0 %v68
    %248 = vmatprep.subr.mxu0 0.0
    %249 = vmatpush1.msra.mxu0 0.0
    %250 = vmatprep.subr.mxu0 0.0
    %251 = vmatpush1.msra.mxu0 0.0
    %252 = vmatprep.subr.mxu0 0.0
    %253 = vmatpush1.msra.mxu0 0.0
    %254 = vmatprep.subr.mxu0 0.0
    %255 = vmatpush1.msra.mxu0 0.0
    %256 = vmatprep.subr.mxu0 0.0
    %257 = vmatpush1.msra.mxu0 0.0
    %258 = vmatprep.subr.mxu0 0.0
    %259 = vmatpush1.msra.mxu0 0.0
    %260 = vmatprep.subr.mxu0 0.0
    %261 = vmatpush1.msra.mxu0 0.0
    %262 = vmatprep.subr.mxu0 0.0
    %263 = vmatpush1.msra.mxu0 0.0
    %264 = vmatprep.subr.mxu0 0.0
    %265 = vmatpush1.msra.mxu0 0.0
    %266 = vmatprep.subr.mxu0 0.0
    %267 = vmatpush1.msra.mxu0 0.0
    %268 = vmatprep.subr.mxu0 0.0
    %269 = vmatpush1.msra.mxu0 0.0
    %270 = vmatprep.subr.mxu0 0.0
    %271 = vmatpush1.msra.mxu0 0.0
    %272 = vmatprep.subr.mxu0 0.0
    %273 = vmatpush1.msra.mxu0 0.0
    %274 = vmatprep.subr.mxu0 0.0
    %275 = vmatpush1.msra.mxu0 0.0
    %276 = vmatprep.subr.mxu0 0.0
    %277 = vmatpush1.msra.mxu0 0.0
    %278 = vmatprep.subr.mxu0 0.0
    %279 = vmatpush1.msra.mxu0 0.0
    %280 = vmatprep.subr.mxu0 0.0
    %281 = vmatpush1.msra.mxu0 0.0
    %282 = vmatprep.subr.mxu0 0.0
    %283 = vmatpush1.msra.mxu0 0.0
    %284 = vmatprep.subr.mxu0 0.0
    %285 = vmatpush1.msra.mxu0 0.0
    %286 = vmatprep.subr.mxu0 0.0
    %287 = vmatpush1.msra.mxu0 0.0
    %288 = vmatprep.subr.mxu0 0.0
    %289 = vmatpush1.msra.mxu0 0.0
    %290 = vmatprep.subr.mxu0 0.0
    %291 = vmatpush1.msra.mxu0 0.0
    %292 = vmatprep.subr.mxu0 0.0
    %293 = vmatpush1.msra.mxu0 0.0
    %294 = vmatprep.subr.mxu0 0.0
    %295 = vmatpush1.msra.mxu0 0.0
    %296 = vmatprep.subr.mxu0 0.0
    %297 = vmatpush1.msra.mxu0 0.0
    %298 = vmatprep.subr.mxu0 0.0
    %299 = vmatpush1.msra.mxu0 0.0
    %300 = vmatprep.subr.mxu0 0.0
    %301 = vmatpush1.msra.mxu0 0.0
    %302 = vmatprep.subr.mxu0 0.0
    %303 = vmatpush1.msra.mxu0 0.0
    %304 = vmatprep.mubr.f32.mxu0 0.0
    %305 = vmatmul.mubr.f32.gmra.mrb[0].mxu0 %v90
    %v306 = vpop.f32.mrb[0].mxu0
    %v307 = vadd.f32 %v239, %v306
    %v308 = vpop.f32.mrb[0].mxu0
    %309 = vdwg.mxu0
    %v310 = vlaneseq
    %v311 = vshrl.u32 %v310, 7
    %v312 = vsub.s32 0, %v311
    %v313 = vrot.slane %v80, %v312
    %314 = vmatprep.subr.mxu0 0.0
    %315 = vmatpush1.msra.mxu0 %v69
    %316 = vmatprep.subr.mxu0 0.0
    %317 = vmatpush1.msra.mxu0 %v70
    %318 = vmatprep.subr.mxu0 0.0
    %319 = vmatpush1.msra.mxu0 %v71
    %320 = vmatprep.subr.mxu0 0.0
    %321 = vmatpush1.msra.mxu0 %v72
    %322 = vmatprep.subr.mxu0 0.0
    %323 = vmatpush1.msra.mxu0 0.0
    %324 = vmatprep.subr.mxu0 0.0
    %325 = vmatpush1.msra.mxu0 0.0
    %326 = vmatprep.subr.mxu0 0.0
    %327 = vmatpush1.msra.mxu0 0.0
    %328 = vmatprep.subr.mxu0 0.0
    %329 = vmatpush1.msra.mxu0 0.0
    %330 = vmatprep.subr.mxu0 0.0
    %331 = vmatpush1.msra.mxu0 0.0
    %332 = vmatprep.subr.mxu0 0.0
    %333 = vmatpush1.msra.mxu0 0.0
    %334 = vmatprep.subr.mxu0 0.0
    %335 = vmatpush1.msra.mxu0 0.0
    %336 = vmatprep.subr.mxu0 0.0
    %337 = vmatpush1.msra.mxu0 0.0
    %338 = vmatprep.subr.mxu0 0.0
    %339 = vmatpush1.msra.mxu0 0.0
    %340 = vmatprep.subr.mxu0 0.0
    %341 = vmatpush1.msra.mxu0 0.0
    %342 = vmatprep.subr.mxu0 0.0
    %343 = vmatpush1.msra.mxu0 0.0
    %344 = vmatprep.subr.mxu0 0.0
    %345 = vmatpush1.msra.mxu0 0.0
    %346 = vmatprep.subr.mxu0 0.0
    %347 = vmatpush1.msra.mxu0 0.0
    %348 = vmatprep.subr.mxu0 0.0
    %349 = vmatpush1.msra.mxu0 0.0
    %350 = vmatprep.subr.mxu0 0.0
    %351 = vmatpush1.msra.mxu0 0.0
    %352 = vmatprep.subr.mxu0 0.0
    %353 = vmatpush1.msra.mxu0 0.0
    %354 = vmatprep.subr.mxu0 0.0
    %355 = vmatpush1.msra.mxu0 0.0
    %356 = vmatprep.subr.mxu0 0.0
    %357 = vmatpush1.msra.mxu0 0.0
    %358 = vmatprep.subr.mxu0 0.0
    %359 = vmatpush1.msra.mxu0 0.0
    %360 = vmatprep.subr.mxu0 0.0
    %361 = vmatpush1.msra.mxu0 0.0
    %362 = vmatprep.subr.mxu0 0.0
    %363 = vmatpush1.msra.mxu0 0.0
    %364 = vmatprep.subr.mxu0 0.0
    %365 = vmatpush1.msra.mxu0 0.0
    %366 = vmatprep.subr.mxu0 0.0
    %367 = vmatpush1.msra.mxu0 0.0
    %368 = vmatprep.subr.mxu0 0.0
    %369 = vmatpush1.msra.mxu0 0.0
    %370 = vmatprep.subr.mxu0 0.0
    %371 = vmatpush1.msra.mxu0 0.0
    %372 = vmatprep.subr.mxu0 0.0
    %373 = vmatpush1.msra.mxu0 0.0
    %374 = vmatprep.subr.mxu0 0.0
    %375 = vmatpush1.msra.mxu0 0.0
    %376 = vmatprep.subr.mxu0 0.0
    %377 = vmatpush1.msra.mxu0 0.0
    %378 = vmatprep.mubr.f32.mxu0 0.0
    %379 = vmatmul.mubr.f32.gmra.mrb[0].mxu0 %v90
    %v380 = vpop.f32.mrb[0].mxu0
    %v381 = vadd.f32 %v313, %v380
    %v382 = vpop.f32.mrb[0].mxu0
    %383 = vdwg.mxu0
    %v385 = vsel %vm88, %v83, 0
    %387 = vmatprep.subr.mxu0 0.0
    %388 = vmatpush1.msra.mxu0 %v57
    %389 = vmatprep.subr.mxu0 0.0
    %390 = vmatpush1.msra.mxu0 %v58
    %391 = vmatprep.subr.mxu0 0.0
    %392 = vmatpush1.msra.mxu0 %v59
    %393 = vmatprep.subr.mxu0 0.0
    %394 = vmatpush1.msra.mxu0 %v60
    %395 = vmatprep.subr.mxu0 0.0
    %396 = vmatpush1.msra.mxu0 0.0
    %397 = vmatprep.subr.mxu0 0.0
    %398 = vmatpush1.msra.mxu0 0.0
    %399 = vmatprep.subr.mxu0 0.0
    %400 = vmatpush1.msra.mxu0 0.0
    %401 = vmatprep.subr.mxu0 0.0
    %402 = vmatpush1.msra.mxu0 0.0
    %403 = vmatprep.subr.mxu0 0.0
    %404 = vmatpush1.msra.mxu0 0.0
    %405 = vmatprep.subr.mxu0 0.0
    %406 = vmatpush1.msra.mxu0 0.0
    %407 = vmatprep.subr.mxu0 0.0
    %408 = vmatpush1.msra.mxu0 0.0
    %409 = vmatprep.subr.mxu0 0.0
    %410 = vmatpush1.msra.mxu0 0.0
    %411 = vmatprep.subr.mxu0 0.0
    %412 = vmatpush1.msra.mxu0 0.0
    %413 = vmatprep.subr.mxu0 0.0
    %414 = vmatpush1.msra.mxu0 0.0
    %415 = vmatprep.subr.mxu0 0.0
    %416 = vmatpush1.msra.mxu0 0.0
    %417 = vmatprep.subr.mxu0 0.0
    %418 = vmatpush1.msra.mxu0 0.0
    %419 = vmatprep.subr.mxu0 0.0
    %420 = vmatpush1.msra.mxu0 0.0
    %421 = vmatprep.subr.mxu0 0.0
    %422 = vmatpush1.msra.mxu0 0.0
    %423 = vmatprep.subr.mxu0 0.0
    %424 = vmatpush1.msra.mxu0 0.0
    %425 = vmatprep.subr.mxu0 0.0
    %426 = vmatpush1.msra.mxu0 0.0
    %427 = vmatprep.subr.mxu0 0.0
    %428 = vmatpush1.msra.mxu0 0.0
    %429 = vmatprep.subr.mxu0 0.0
    %430 = vmatpush1.msra.mxu0 0.0
    %431 = vmatprep.subr.mxu0 0.0
    %432 = vmatpush1.msra.mxu0 0.0
    %433 = vmatprep.subr.mxu0 0.0
    %434 = vmatpush1.msra.mxu0 0.0
    %435 = vmatprep.subr.mxu0 0.0
    %436 = vmatpush1.msra.mxu0 0.0
    %437 = vmatprep.subr.mxu0 0.0
    %438 = vmatpush1.msra.mxu0 0.0
    %439 = vmatprep.subr.mxu0 0.0
    %440 = vmatpush1.msra.mxu0 0.0
    %441 = vmatprep.subr.mxu0 0.0
    %442 = vmatpush1.msra.mxu0 0.0
    %443 = vmatprep.subr.mxu0 0.0
    %444 = vmatpush1.msra.mxu0 0.0
    %445 = vmatprep.subr.mxu0 0.0
    %446 = vmatpush1.msra.mxu0 0.0
    %447 = vmatprep.subr.mxu0 0.0
    %448 = vmatpush1.msra.mxu0 0.0
    %449 = vmatprep.subr.mxu0 0.0
    %450 = vmatpush1.msra.mxu0 0.0
    %451 = vmatprep.mubr.f32.mxu0 0.0
    %452 = vmatmul.mubr.f32.gmra.mrb[0].mxu0 %v385
    %v453 = vpop.f32.mrb[0].mxu0
    %v454 = vadd.f32 %v77, %v453
    %v455 = vpop.f32.mrb[0].mxu0
    %456 = vdwg.mxu0
    %457 = vmatprep.subr.mxu0 0.0
    %458 = vmatpush1.msra.mxu0 %v61
    %459 = vmatprep.subr.mxu0 0.0
    %460 = vmatpush1.msra.mxu0 %v62
    %461 = vmatprep.subr.mxu0 0.0
    %462 = vmatpush1.msra.mxu0 %v63
    %463 = vmatprep.subr.mxu0 0.0
    %464 = vmatpush1.msra.mxu0 %v64
    %465 = vmatprep.subr.mxu0 0.0
    %466 = vmatpush1.msra.mxu0 0.0
    %467 = vmatprep.subr.mxu0 0.0
    %468 = vmatpush1.msra.mxu0 0.0
    %469 = vmatprep.subr.mxu0 0.0
    %470 = vmatpush1.msra.mxu0 0.0
    %471 = vmatprep.subr.mxu0 0.0
    %472 = vmatpush1.msra.mxu0 0.0
    %473 = vmatprep.subr.mxu0 0.0
    %474 = vmatpush1.msra.mxu0 0.0
    %475 = vmatprep.subr.mxu0 0.0
    %476 = vmatpush1.msra.mxu0 0.0
    %477 = vmatprep.subr.mxu0 0.0
    %478 = vmatpush1.msra.mxu0 0.0
    %479 = vmatprep.subr.mxu0 0.0
    %480 = vmatpush1.msra.mxu0 0.0
    %481 = vmatprep.subr.mxu0 0.0
    %482 = vmatpush1.msra.mxu0 0.0
    %483 = vmatprep.subr.mxu0 0.0
    %484 = vmatpush1.msra.mxu0 0.0
    %485 = vmatprep.subr.mxu0 0.0
    %486 = vmatpush1.msra.mxu0 0.0
    %487 = vmatprep.subr.mxu0 0.0
    %488 = vmatpush1.msra.mxu0 0.0
    %489 = vmatprep.subr.mxu0 0.0
    %490 = vmatpush1.msra.mxu0 0.0
    %491 = vmatprep.subr.mxu0 0.0
    %492 = vmatpush1.msra.mxu0 0.0
    %493 = vmatprep.subr.mxu0 0.0
    %494 = vmatpush1.msra.mxu0 0.0
    %495 = vmatprep.subr.mxu0 0.0
    %496 = vmatpush1.msra.mxu0 0.0
    %497 = vmatprep.subr.mxu0 0.0
    %498 = vmatpush1.msra.mxu0 0.0
    %499 = vmatprep.subr.mxu0 0.0
    %500 = vmatpush1.msra.mxu0 0.0
    %501 = vmatprep.subr.mxu0 0.0
    %502 = vmatpush1.msra.mxu0 0.0
    %503 = vmatprep.subr.mxu0 0.0
    %504 = vmatpush1.msra.mxu0 0.0
    %505 = vmatprep.subr.mxu0 0.0
    %506 = vmatpush1.msra.mxu0 0.0
    %507 = vmatprep.subr.mxu0 0.0
    %508 = vmatpush1.msra.mxu0 0.0
    %509 = vmatprep.subr.mxu0 0.0
    %510 = vmatpush1.msra.mxu0 0.0
    %511 = vmatprep.subr.mxu0 0.0
    %512 = vmatpush1.msra.mxu0 0.0
    %513 = vmatprep.subr.mxu0 0.0
    %514 = vmatpush1.msra.mxu0 0.0
    %515 = vmatprep.subr.mxu0 0.0
    %516 = vmatpush1.msra.mxu0 0.0
    %517 = vmatprep.subr.mxu0 0.0
    %518 = vmatpush1.msra.mxu0 0.0
    %519 = vmatprep.subr.mxu0 0.0
    %520 = vmatpush1.msra.mxu0 0.0
    %521 = vmatprep.mubr.f32.mxu0 0.0
    %522 = vmatmul.mubr.f32.gmra.mrb[0].mxu0 %v385
    %v523 = vpop.f32.mrb[0].mxu0
    %v524 = vadd.f32 %v78, %v523
    %v525 = vpop.f32.mrb[0].mxu0
    %526 = vdwg.mxu0
    %527 = vmatprep.subr.mxu0 0.0
    %528 = vmatpush1.msra.mxu0 %v65
    %529 = vmatprep.subr.mxu0 0.0
    %530 = vmatpush1.msra.mxu0 %v66
    %531 = vmatprep.subr.mxu0 0.0
    %532 = vmatpush1.msra.mxu0 %v67
    %533 = vmatprep.subr.mxu0 0.0
    %534 = vmatpush1.msra.mxu0 %v68
    %535 = vmatprep.subr.mxu0 0.0
    %536 = vmatpush1.msra.mxu0 0.0
    %537 = vmatprep.subr.mxu0 0.0
    %538 = vmatpush1.msra.mxu0 0.0
    %539 = vmatprep.subr.mxu0 0.0
    %540 = vmatpush1.msra.mxu0 0.0
    %541 = vmatprep.subr.mxu0 0.0
    %542 = vmatpush1.msra.mxu0 0.0
    %543 = vmatprep.subr.mxu0 0.0
    %544 = vmatpush1.msra.mxu0 0.0
    %545 = vmatprep.subr.mxu0 0.0
    %546 = vmatpush1.msra.mxu0 0.0
    %547 = vmatprep.subr.mxu0 0.0
    %548 = vmatpush1.msra.mxu0 0.0
    %549 = vmatprep.subr.mxu0 0.0
    %550 = vmatpush1.msra.mxu0 0.0
    %551 = vmatprep.subr.mxu0 0.0
    %552 = vmatpush1.msra.mxu0 0.0
    %553 = vmatprep.subr.mxu0 0.0
    %554 = vmatpush1.msra.mxu0 0.0
    %555 = vmatprep.subr.mxu0 0.0
    %556 = vmatpush1.msra.mxu0 0.0
    %557 = vmatprep.subr.mxu0 0.0
    %558 = vmatpush1.msra.mxu0 0.0
    %559 = vmatprep.subr.mxu0 0.0
    %560 = vmatpush1.msra.mxu0 0.0
    %561 = vmatprep.subr.mxu0 0.0
    %562 = vmatpush1.msra.mxu0 0.0
    %563 = vmatprep.subr.mxu0 0.0
    %564 = vmatpush1.msra.mxu0 0.0
    %565 = vmatprep.subr.mxu0 0.0
    %566 = vmatpush1.msra.mxu0 0.0
    %567 = vmatprep.subr.mxu0 0.0
    %568 = vmatpush1.msra.mxu0 0.0
    %569 = vmatprep.subr.mxu0 0.0
    %570 = vmatpush1.msra.mxu0 0.0
    %571 = vmatprep.subr.mxu0 0.0
    %572 = vmatpush1.msra.mxu0 0.0
    %573 = vmatprep.subr.mxu0 0.0
    %574 = vmatpush1.msra.mxu0 0.0
    %575 = vmatprep.subr.mxu0 0.0
    %576 = vmatpush1.msra.mxu0 0.0
    %577 = vmatprep.subr.mxu0 0.0
    %578 = vmatpush1.msra.mxu0 0.0
    %579 = vmatprep.subr.mxu0 0.0
    %580 = vmatpush1.msra.mxu0 0.0
    %581 = vmatprep.subr.mxu0 0.0
    %582 = vmatpush1.msra.mxu0 0.0
    %583 = vmatprep.subr.mxu0 0.0
    %584 = vmatpush1.msra.mxu0 0.0
    %585 = vmatprep.subr.mxu0 0.0
    %586 = vmatpush1.msra.mxu0 0.0
    %587 = vmatprep.subr.mxu0 0.0
    %588 = vmatpush1.msra.mxu0 0.0
    %589 = vmatprep.subr.mxu0 0.0
    %590 = vmatpush1.msra.mxu0 0.0
    %591 = vmatprep.mubr.f32.mxu0 0.0
    %592 = vmatmul.mubr.f32.gmra.mrb[0].mxu0 %v385
    %v593 = vpop.f32.mrb[0].mxu0
    %v594 = vadd.f32 %v79, %v593
    %v595 = vpop.f32.mrb[0].mxu0
    %596 = vdwg.mxu0
    %597 = vmatprep.subr.mxu0 0.0
    %598 = vmatpush1.msra.mxu0 %v69
    %599 = vmatprep.subr.mxu0 0.0
    %600 = vmatpush1.msra.mxu0 %v70
    %601 = vmatprep.subr.mxu0 0.0
    %602 = vmatpush1.msra.mxu0 %v71
    %603 = vmatprep.subr.mxu0 0.0
    %604 = vmatpush1.msra.mxu0 %v72
    %605 = vmatprep.subr.mxu0 0.0
    %606 = vmatpush1.msra.mxu0 0.0
    %607 = vmatprep.subr.mxu0 0.0
    %608 = vmatpush1.msra.mxu0 0.0
    %609 = vmatprep.subr.mxu0 0.0
    %610 = vmatpush1.msra.mxu0 0.0
    %611 = vmatprep.subr.mxu0 0.0
    %612 = vmatpush1.msra.mxu0 0.0
    %613 = vmatprep.subr.mxu0 0.0
    %614 = vmatpush1.msra.mxu0 0.0
    %615 = vmatprep.subr.mxu0 0.0
    %616 = vmatpush1.msra.mxu0 0.0
    %617 = vmatprep.subr.mxu0 0.0
    %618 = vmatpush1.msra.mxu0 0.0
    %619 = vmatprep.subr.mxu0 0.0
    %620 = vmatpush1.msra.mxu0 0.0
    %621 = vmatprep.subr.mxu0 0.0
    %622 = vmatpush1.msra.mxu0 0.0
    %623 = vmatprep.subr.mxu0 0.0
    %624 = vmatpush1.msra.mxu0 0.0
    %625 = vmatprep.subr.mxu0 0.0
    %626 = vmatpush1.msra.mxu0 0.0
    %627 = vmatprep.subr.mxu0 0.0
    %628 = vmatpush1.msra.mxu0 0.0
    %629 = vmatprep.subr.mxu0 0.0
    %630 = vmatpush1.msra.mxu0 0.0
    %631 = vmatprep.subr.mxu0 0.0
    %632 = vmatpush1.msra.mxu0 0.0
    %633 = vmatprep.subr.mxu0 0.0
    %634 = vmatpush1.msra.mxu0 0.0
    %635 = vmatprep.subr.mxu0 0.0
    %636 = vmatpush1.msra.mxu0 0.0
    %637 = vmatprep.subr.mxu0 0.0
    %638 = vmatpush1.msra.mxu0 0.0
    %639 = vmatprep.subr.mxu0 0.0
    %640 = vmatpush1.msra.mxu0 0.0
    %641 = vmatprep.subr.mxu0 0.0
    %642 = vmatpush1.msra.mxu0 0.0
    %643 = vmatprep.subr.mxu0 0.0
    %644 = vmatpush1.msra.mxu0 0.0
    %645 = vmatprep.subr.mxu0 0.0
    %646 = vmatpush1.msra.mxu0 0.0
    %647 = vmatprep.subr.mxu0 0.0
    %648 = vmatpush1.msra.mxu0 0.0
    %649 = vmatprep.subr.mxu0 0.0
    %650 = vmatpush1.msra.mxu0 0.0
    %651 = vmatprep.subr.mxu0 0.0
    %652 = vmatpush1.msra.mxu0 0.0
    %653 = vmatprep.subr.mxu0 0.0
    %654 = vmatpush1.msra.mxu0 0.0
    %655 = vmatprep.subr.mxu0 0.0
    %656 = vmatpush1.msra.mxu0 0.0
    %657 = vmatprep.subr.mxu0 0.0
    %658 = vmatpush1.msra.mxu0 0.0
    %659 = vmatprep.subr.mxu0 0.0
    %660 = vmatpush1.msra.mxu0 0.0
    %661 = vmatprep.mubr.f32.mxu0 0.0
    %662 = vmatmul.mubr.f32.gmra.mrb[0].mxu0 %v385
    %v663 = vpop.f32.mrb[0].mxu0
    %v664 = vadd.f32 %v80, %v663
    %v665 = vpop.f32.mrb[0].mxu0
    %666 = vdwg.mxu0
    %v667 = vlaneseq
    %v668 = vshrl.u32 %v667, 7
    %v669 = vlaneseq
    %v670 = vand.u32 %v669, 127
    %vm671 = vcmp.eq.s32.totalorder %v668, 0
    %s672 = sld [smem:[#allocation2]]
    %v673 = vstv %s672
    %vm674 = vcmp.eq.s32.totalorder %v670, %v673
    %vm675 = vmand %vm671, %vm674
    %v676 = vsel %vm675, 1.0, 0.0
    %vm677 = vcmp.eq.s32.totalorder %v668, 1
    %s678 = sld [smem:[#allocation2 + $0x1]]
    %v679 = vstv %s678
    %vm680 = vcmp.eq.s32.totalorder %v670, %v679
    %vm681 = vmand %vm677, %vm680
    %v682 = vsel %vm681, 1.0, %v676
    %v684 = vsel %vm88, 0.0, 0
    %686 = vmatprep.subr.mxu0 0.0
    %687 = vmatpush1.msra.mxu0 %v41
    %688 = vmatprep.subr.mxu0 0.0
    %689 = vmatpush1.msra.mxu0 %v42
    %690 = vmatprep.subr.mxu0 0.0
    %691 = vmatpush1.msra.mxu0 %v43
    %692 = vmatprep.subr.mxu0 0.0
    %693 = vmatpush1.msra.mxu0 %v44
    %694 = vmatprep.subr.mxu0 0.0
    %695 = vmatpush1.msra.mxu0 0.0
    %696 = vmatprep.subr.mxu0 0.0
    %697 = vmatpush1.msra.mxu0 0.0
    %698 = vmatprep.subr.mxu0 0.0
    %699 = vmatpush1.msra.mxu0 0.0
    %700 = vmatprep.subr.mxu0 0.0
    %701 = vmatpush1.msra.mxu0 0.0
    %702 = vmatprep.subr.mxu0 0.0
    %703 = vmatpush1.msra.mxu0 0.0
    %704 = vmatprep.subr.mxu0 0.0
    %705 = vmatpush1.msra.mxu0 0.0
    %706 = vmatprep.subr.mxu0 0.0
    %707 = vmatpush1.msra.mxu0 0.0
    %708 = vmatprep.subr.mxu0 0.0
    %709 = vmatpush1.msra.mxu0 0.0
    %710 = vmatprep.subr.mxu0 0.0
    %711 = vmatpush1.msra.mxu0 0.0
    %712 = vmatprep.subr.mxu0 0.0
    %713 = vmatpush1.msra.mxu0 0.0
    %714 = vmatprep.subr.mxu0 0.0
    %715 = vmatpush1.msra.mxu0 0.0
    %716 = vmatprep.subr.mxu0 0.0
    %717 = vmatpush1.msra.mxu0 0.0
    %718 = vmatprep.subr.mxu0 0.0
    %719 = vmatpush1.msra.mxu0 0.0
    %720 = vmatprep.subr.mxu0 0.0
    %721 = vmatpush1.msra.mxu0 0.0
    %722 = vmatprep.subr.mxu0 0.0
    %723 = vmatpush1.msra.mxu0 0.0
    %724 = vmatprep.subr.mxu0 0.0
    %725 = vmatpush1.msra.mxu0 0.0
    %726 = vmatprep.subr.mxu0 0.0
    %727 = vmatpush1.msra.mxu0 0.0
    %728 = vmatprep.subr.mxu0 0.0
    %729 = vmatpush1.msra.mxu0 0.0
    %730 = vmatprep.subr.mxu0 0.0
    %731 = vmatpush1.msra.mxu0 0.0
    %732 = vmatprep.subr.mxu0 0.0
    %733 = vmatpush1.msra.mxu0 0.0
    %734 = vmatprep.subr.mxu0 0.0
    %735 = vmatpush1.msra.mxu0 0.0
    %736 = vmatprep.subr.mxu0 0.0
    %737 = vmatpush1.msra.mxu0 0.0
    %738 = vmatprep.subr.mxu0 0.0
    %739 = vmatpush1.msra.mxu0 0.0
    %740 = vmatprep.subr.mxu0 0.0
    %741 = vmatpush1.msra.mxu0 0.0
    %742 = vmatprep.subr.mxu0 0.0
    %743 = vmatpush1.msra.mxu0 0.0
    %744 = vmatprep.subr.mxu0 0.0
    %745 = vmatpush1.msra.mxu0 0.0
    %746 = vmatprep.subr.mxu0 0.0
    %747 = vmatpush1.msra.mxu0 0.0
    %748 = vmatprep.subr.mxu0 0.0
    %749 = vmatpush1.msra.mxu0 0.0
    %750 = vmatprep.mubr.f32.mxu0 0.0
    %751 = vmatmul.mubr.f32.gmra.mrb[0].mxu0 %v684
    %v752 = vpop.f32.mrb[0].mxu0
    %v753 = vadd.f32 0.0, %v752
    %v754 = vpop.f32.mrb[0].mxu0
    %755 = vdwg.mxu0
    %v756 = vadd.f32 %v159, %v753
    %v757 = vxor.u32 %v756, 2147483648
    %v758 = vmul.f32 %v757, 1.442695
    %v759 = vpow.pop %v758
    %v760 = vadd.f32 %v759, 1.0
    %v761 = vrcp.pop %v760
    %v762 = vmul.f32 1.0, %v761
    %763 = vmatprep.subr.mxu0 0.0
    %764 = vmatpush1.msra.mxu0 %v45
    %765 = vmatprep.subr.mxu0 0.0
    %766 = vmatpush1.msra.mxu0 %v46
    %767 = vmatprep.subr.mxu0 0.0
    %768 = vmatpush1.msra.mxu0 %v47
    %769 = vmatprep.subr.mxu0 0.0
    %770 = vmatpush1.msra.mxu0 %v48
    %771 = vmatprep.subr.mxu0 0.0
    %772 = vmatpush1.msra.mxu0 0.0
    %773 = vmatprep.subr.mxu0 0.0
    %774 = vmatpush1.msra.mxu0 0.0
    %775 = vmatprep.subr.mxu0 0.0
    %776 = vmatpush1.msra.mxu0 0.0
    %777 = vmatprep.subr.mxu0 0.0
    %778 = vmatpush1.msra.mxu0 0.0
    %779 = vmatprep.subr.mxu0 0.0
    %780 = vmatpush1.msra.mxu0 0.0
    %781 = vmatprep.subr.mxu0 0.0
    %782 = vmatpush1.msra.mxu0 0.0
    %783 = vmatprep.subr.mxu0 0.0
    %784 = vmatpush1.msra.mxu0 0.0
    %785 = vmatprep.subr.mxu0 0.0
    %786 = vmatpush1.msra.mxu0 0.0
    %787 = vmatprep.subr.mxu0 0.0
    %788 = vmatpush1.msra.mxu0 0.0
    %789 = vmatprep.subr.mxu0 0.0
    %790 = vmatpush1.msra.mxu0 0.0
    %791 = vmatprep.subr.mxu0 0.0
    %792 = vmatpush1.msra.mxu0 0.0
    %793 = vmatprep.subr.mxu0 0.0
    %794 = vmatpush1.msra.mxu0 0.0
    %795 = vmatprep.subr.mxu0 0.0
    %796 = vmatpush1.msra.mxu0 0.0
    %797 = vmatprep.subr.mxu0 0.0
    %798 = vmatpush1.msra.mxu0 0.0
    %799 = vmatprep.subr.mxu0 0.0
    %800 = vmatpush1.msra.mxu0 0.0
    %801 = vmatprep.subr.mxu0 0.0
    %802 = vmatpush1.msra.mxu0 0.0
    %803 = vmatprep.subr.mxu0 0.0
    %804 = vmatpush1.msra.mxu0 0.0
    %805 = vmatprep.subr.mxu0 0.0
    %806 = vmatpush1.msra.mxu0 0.0
    %807 = vmatprep.subr.mxu0 0.0
    %808 = vmatpush1.msra.mxu0 0.0
    %809 = vmatprep.subr.mxu0 0.0
    %810 = vmatpush1.msra.mxu0 0.0
    %811 = vmatprep.subr.mxu0 0.0
    %812 = vmatpush1.msra.mxu0 0.0
    %813 = vmatprep.subr.mxu0 0.0
    %814 = vmatpush1.msra.mxu0 0.0
    %815 = vmatprep.subr.mxu0 0.0
    %816 = vmatpush1.msra.mxu0 0.0
    %817 = vmatprep.subr.mxu0 0.0
    %818 = vmatpush1.msra.mxu0 0.0
    %819 = vmatprep.subr.mxu0 0.0
    %820 = vmatpush1.msra.mxu0 0.0
    %821 = vmatprep.subr.mxu0 0.0
    %822 = vmatpush1.msra.mxu0 0.0
    %823 = vmatprep.subr.mxu0 0.0
    %824 = vmatpush1.msra.mxu0 0.0
    %825 = vmatprep.subr.mxu0 0.0
    %826 = vmatpush1.msra.mxu0 0.0
    %827 = vmatprep.mubr.f32.mxu0 0.0
    %828 = vmatmul.mubr.f32.gmra.mrb[0].mxu0 %v684
    %v829 = vpop.f32.mrb[0].mxu0
    %v830 = vadd.f32 0.0, %v829
    %v831 = vpop.f32.mrb[0].mxu0
    %832 = vdwg.mxu0
    %v833 = vadd.f32 %v233, %v830
    %v834 = vxor.u32 %v833, 2147483648
    %v835 = vmul.f32 %v834, 1.442695
    %v836 = vpow.pop %v835
    %v837 = vadd.f32 %v836, 1.0
    %v838 = vrcp.pop %v837
    %v839 = vmul.f32 1.0, %v838
    %840 = vmatprep.subr.mxu0 0.0
    %841 = vmatpush1.msra.mxu0 %v49
    %842 = vmatprep.subr.mxu0 0.0
    %843 = vmatpush1.msra.mxu0 %v50
    %844 = vmatprep.subr.mxu0 0.0
    %845 = vmatpush1.msra.mxu0 %v51
    %846 = vmatprep.subr.mxu0 0.0
    %847 = vmatpush1.msra.mxu0 %v52
    %848 = vmatprep.subr.mxu0 0.0
    %849 = vmatpush1.msra.mxu0 0.0
    %850 = vmatprep.subr.mxu0 0.0
    %851 = vmatpush1.msra.mxu0 0.0
    %852 = vmatprep.subr.mxu0 0.0
    %853 = vmatpush1.msra.mxu0 0.0
    %854 = vmatprep.subr.mxu0 0.0
    %855 = vmatpush1.msra.mxu0 0.0
    %856 = vmatprep.subr.mxu0 0.0
    %857 = vmatpush1.msra.mxu0 0.0
    %858 = vmatprep.subr.mxu0 0.0
    %859 = vmatpush1.msra.mxu0 0.0
    %860 = vmatprep.subr.mxu0 0.0
    %861 = vmatpush1.msra.mxu0 0.0
    %862 = vmatprep.subr.mxu0 0.0
    %863 = vmatpush1.msra.mxu0 0.0
    %864 = vmatprep.subr.mxu0 0.0
    %865 = vmatpush1.msra.mxu0 0.0
    %866 = vmatprep.subr.mxu0 0.0
    %867 = vmatpush1.msra.mxu0 0.0
    %868 = vmatprep.subr.mxu0 0.0
    %869 = vmatpush1.msra.mxu0 0.0
    %870 = vmatprep.subr.mxu0 0.0
    %871 = vmatpush1.msra.mxu0 0.0
    %872 = vmatprep.subr.mxu0 0.0
    %873 = vmatpush1.msra.mxu0 0.0
    %874 = vmatprep.subr.mxu0 0.0
    %875 = vmatpush1.msra.mxu0 0.0
    %876 = vmatprep.subr.mxu0 0.0
    %877 = vmatpush1.msra.mxu0 0.0
    %878 = vmatprep.subr.mxu0 0.0
    %879 = vmatpush1.msra.mxu0 0.0
    %880 = vmatprep.subr.mxu0 0.0
    %881 = vmatpush1.msra.mxu0 0.0
    %882 = vmatprep.subr.mxu0 0.0
    %883 = vmatpush1.msra.mxu0 0.0
    %884 = vmatprep.subr.mxu0 0.0
    %885 = vmatpush1.msra.mxu0 0.0
    %886 = vmatprep.subr.mxu0 0.0
    %887 = vmatpush1.msra.mxu0 0.0
    %888 = vmatprep.subr.mxu0 0.0
    %889 = vmatpush1.msra.mxu0 0.0
    %890 = vmatprep.subr.mxu0 0.0
    %891 = vmatpush1.msra.mxu0 0.0
    %892 = vmatprep.subr.mxu0 0.0
    %893 = vmatpush1.msra.mxu0 0.0
    %894 = vmatprep.subr.mxu0 0.0
    %895 = vmatpush1.msra.mxu0 0.0
    %896 = vmatprep.subr.mxu0 0.0
    %897 = vmatpush1.msra.mxu0 0.0
    %898 = vmatprep.subr.mxu0 0.0
    %899 = vmatpush1.msra.mxu0 0.0
    %900 = vmatprep.subr.mxu0 0.0
    %901 = vmatpush1.msra.mxu0 0.0
    %902 = vmatprep.subr.mxu0 0.0
    %903 = vmatpush1.msra.mxu0 0.0
    %904 = vmatprep.mubr.f32.mxu0 0.0
    %905 = vmatmul.mubr.f32.gmra.mrb[0].mxu0 %v684
    %v906 = vpop.f32.mrb[0].mxu0
    %v907 = vadd.f32 0.0, %v906
    %v908 = vpop.f32.mrb[0].mxu0
    %909 = vdwg.mxu0
    %v910 = vadd.f32 %v307, %v907
    %v911 = vtanh.pop %v910
    %912 = vmatprep.subr.mxu0 0.0
    %913 = vmatpush1.msra.mxu0 %v53
    %914 = vmatprep.subr.mxu0 0.0
    %915 = vmatpush1.msra.mxu0 %v54
    %916 = vmatprep.subr.mxu0 0.0
    %917 = vmatpush1.msra.mxu0 %v55
    %918 = vmatprep.subr.mxu0 0.0
    %919 = vmatpush1.msra.mxu0 %v56
    %920 = vmatprep.subr.mxu0 0.0
    %921 = vmatpush1.msra.mxu0 0.0
    %922 = vmatprep.subr.mxu0 0.0
    %923 = vmatpush1.msra.mxu0 0.0
    %924 = vmatprep.subr.mxu0 0.0
    %925 = vmatpush1.msra.mxu0 0.0
    %926 = vmatprep.subr.mxu0 0.0
    %927 = vmatpush1.msra.mxu0 0.0
    %928 = vmatprep.subr.mxu0 0.0
    %929 = vmatpush1.msra.mxu0 0.0
    %930 = vmatprep.subr.mxu0 0.0
    %931 = vmatpush1.msra.mxu0 0.0
    %932 = vmatprep.subr.mxu0 0.0
    %933 = vmatpush1.msra.mxu0 0.0
    %934 = vmatprep.subr.mxu0 0.0
    %935 = vmatpush1.msra.mxu0 0.0
    %936 = vmatprep.subr.mxu0 0.0
    %937 = vmatpush1.msra.mxu0 0.0
    %938 = vmatprep.subr.mxu0 0.0
    %939 = vmatpush1.msra.mxu0 0.0
    %940 = vmatprep.subr.mxu0 0.0
    %941 = vmatpush1.msra.mxu0 0.0
    %942 = vmatprep.subr.mxu0 0.0
    %943 = vmatpush1.msra.mxu0 0.0
    %944 = vmatprep.subr.mxu0 0.0
    %945 = vmatpush1.msra.mxu0 0.0
    %946 = vmatprep.subr.mxu0 0.0
    %947 = vmatpush1.msra.mxu0 0.0
    %948 = vmatprep.subr.mxu0 0.0
    %949 = vmatpush1.msra.mxu0 0.0
    %950 = vmatprep.subr.mxu0 0.0
    %951 = vmatpush1.msra.mxu0 0.0
    %952 = vmatprep.subr.mxu0 0.0
    %953 = vmatpush1.msra.mxu0 0.0
    %954 = vmatprep.subr.mxu0 0.0
    %955 = vmatpush1.msra.mxu0 0.0
    %956 = vmatprep.subr.mxu0 0.0
    %957 = vmatpush1.msra.mxu0 0.0
    %958 = vmatprep.subr.mxu0 0.0
    %959 = vmatpush1.msra.mxu0 0.0
    %960 = vmatprep.subr.mxu0 0.0
    %961 = vmatpush1.msra.mxu0 0.0
    %962 = vmatprep.subr.mxu0 0.0
    %963 = vmatpush1.msra.mxu0 0.0
    %964 = vmatprep.subr.mxu0 0.0
    %965 = vmatpush1.msra.mxu0 0.0
    %966 = vmatprep.subr.mxu0 0.0
    %967 = vmatpush1.msra.mxu0 0.0
    %968 = vmatprep.subr.mxu0 0.0
    %969 = vmatpush1.msra.mxu0 0.0
    %970 = vmatprep.subr.mxu0 0.0
    %971 = vmatpush1.msra.mxu0 0.0
    %972 = vmatprep.subr.mxu0 0.0
    %973 = vmatpush1.msra.mxu0 0.0
    %974 = vmatprep.subr.mxu0 0.0
    %975 = vmatpush1.msra.mxu0 0.0
    %976 = vmatprep.mubr.f32.mxu0 0.0
    %977 = vmatmul.mubr.f32.gmra.mrb[0].mxu0 %v684
    %v978 = vpop.f32.mrb[0].mxu0
    %v979 = vadd.f32 0.0, %v978
    %v980 = vpop.f32.mrb[0].mxu0
    %981 = vdwg.mxu0
    %v982 = vadd.f32 %v381, %v979
    %v983 = vxor.u32 %v982, 2147483648
    %v984 = vmul.f32 %v983, 1.442695
    %v985 = vpow.pop %v984
    %v986 = vadd.f32 %v985, 1.0
    %v987 = vrcp.pop %v986
    %v988 = vmul.f32 1.0, %v987
    %v989 = vmul.f32 %v839, 0.0
    %v990 = vmul.f32 %v762, %v911
    %v991 = vadd.f32 %v989, %v990
    %v992 = vtanh.pop %v991
    %v993 = vmul.f32 %v988, %v992
    %v994 = vlaneseq
    %v995 = vshrl.u32 %v994, 7
    %v996 = vsub.s32 0, %v995
    %v997 = vrot.slane %v81, %v996
    %v999 = vsel %vm88, %v993, 0
    %1001 = vmatprep.subr.mxu0 0.0
    %1002 = vmatpush1.msra.mxu0 %v73
    %1003 = vmatprep.subr.mxu0 0.0
    %1004 = vmatpush1.msra.mxu0 %v74
    %1005 = vmatprep.subr.mxu0 0.0
    %1006 = vmatpush1.msra.mxu0 %v75
    %1007 = vmatprep.subr.mxu0 0.0
    %1008 = vmatpush1.msra.mxu0 %v76
    %1009 = vmatprep.subr.mxu0 0.0
    %1010 = vmatpush1.msra.mxu0 0.0
    %1011 = vmatprep.subr.mxu0 0.0
    %1012 = vmatpush1.msra.mxu0 0.0
    %1013 = vmatprep.subr.mxu0 0.0
    %1014 = vmatpush1.msra.mxu0 0.0
    %1015 = vmatprep.subr.mxu0 0.0
    %1016 = vmatpush1.msra.mxu0 0.0
    %1017 = vmatprep.subr.mxu0 0.0
    %1018 = vmatpush1.msra.mxu0 0.0
    %1019 = vmatprep.subr.mxu0 0.0
    %1020 = vmatpush1.msra.mxu0 0.0
    %1021 = vmatprep.subr.mxu0 0.0
    %1022 = vmatpush1.msra.mxu0 0.0
    %1023 = vmatprep.subr.mxu0 0.0
    %1024 = vmatpush1.msra.mxu0 0.0
    %1025 = vmatprep.subr.mxu0 0.0
    %1026 = vmatpush1.msra.mxu0 0.0
    %1027 = vmatprep.subr.mxu0 0.0
    %1028 = vmatpush1.msra.mxu0 0.0
    %1029 = vmatprep.subr.mxu0 0.0
    %1030 = vmatpush1.msra.mxu0 0.0
    %1031 = vmatprep.subr.mxu0 0.0
    %1032 = vmatpush1.msra.mxu0 0.0
    %1033 = vmatprep.subr.mxu0 0.0
    %1034 = vmatpush1.msra.mxu0 0.0
    %1035 = vmatprep.subr.mxu0 0.0
    %1036 = vmatpush1.msra.mxu0 0.0
    %1037 = vmatprep.subr.mxu0 0.0
    %1038 = vmatpush1.msra.mxu0 0.0
    %1039 = vmatprep.subr.mxu0 0.0
    %1040 = vmatpush1.msra.mxu0 0.0
    %1041 = vmatprep.subr.mxu0 0.0
    %1042 = vmatpush1.msra.mxu0 0.0
    %1043 = vmatprep.subr.mxu0 0.0
    %1044 = vmatpush1.msra.mxu0 0.0
    %1045 = vmatprep.subr.mxu0 0.0
    %1046 = vmatpush1.msra.mxu0 0.0
    %1047 = vmatprep.subr.mxu0 0.0
    %1048 = vmatpush1.msra.mxu0 0.0
    %1049 = vmatprep.subr.mxu0 0.0
    %1050 = vmatpush1.msra.mxu0 0.0
    %1051 = vmatprep.subr.mxu0 0.0
    %1052 = vmatpush1.msra.mxu0 0.0
    %1053 = vmatprep.subr.mxu0 0.0
    %1054 = vmatpush1.msra.mxu0 0.0
    %1055 = vmatprep.subr.mxu0 0.0
    %1056 = vmatpush1.msra.mxu0 0.0
    %1057 = vmatprep.subr.mxu0 0.0
    %1058 = vmatpush1.msra.mxu0 0.0
    %1059 = vmatprep.subr.mxu0 0.0
    %1060 = vmatpush1.msra.mxu0 0.0
    %1061 = vmatprep.subr.mxu0 0.0
    %1062 = vmatpush1.msra.mxu0 0.0
    %1063 = vmatprep.subr.mxu0 0.0
    %1064 = vmatpush1.msra.mxu0 0.0
    %1065 = vmatprep.mubr.f32.mxu0 0.0
    %1066 = vmatmul.mubr.f32.gmra.mrb[0].mxu0 %v999
    %v1067 = vpop.f32.mrb[0].mxu0
    %v1068 = vadd.f32 %v997, %v1067
    %v1069 = vpop.f32.mrb[0].mxu0
    %1070 = vdwg.mxu0
    %1071 = vst [vmem:[%s3] sm:$0x3] %v1068
    %v1072 = vmul.f32 %v993, %v993
    %vm1073 = vcmask 254976
    %v1074 = vsel %vm1073, %v1072, 0.0
    %1075 = vadd.xlane.f32.xlu0 %v1074
    %v1076 = vpop.xlane.xlu0 %1075
    %v1077 = vsub.f32 %v1076, %v1076
    %v1078 = vmul.f32 %v1077, 1.442695
    %v1079 = vpow.pop %v1078
    %v1080 = vmul.f32 %v1079, %v682
    %v1081 = vrcp.pop %v1079
    %v1082 = vmul.f32 %v1080, %v1081
    %1083 = vmatprep.subr.mxu0 0.0
    %1084 = vmatpush1.msra.mxu0 %v41
    %1085 = vmatprep.subr.mxu0 0.0
    %1086 = vmatpush1.msra.mxu0 %v42
    %1087 = vmatprep.subr.mxu0 0.0
    %1088 = vmatpush1.msra.mxu0 %v43
    %1089 = vmatprep.subr.mxu0 0.0
    %1090 = vmatpush1.msra.mxu0 %v44
    %1091 = vmatprep.subr.mxu0 0.0
    %1092 = vmatpush1.msra.mxu0 0.0
    %1093 = vmatprep.subr.mxu0 0.0
    %1094 = vmatpush1.msra.mxu0 0.0
    %1095 = vmatprep.subr.mxu0 0.0
    %1096 = vmatpush1.msra.mxu0 0.0
    %1097 = vmatprep.subr.mxu0 0.0
    %1098 = vmatpush1.msra.mxu0 0.0
    %1099 = vmatprep.subr.mxu0 0.0
    %1100 = vmatpush1.msra.mxu0 0.0
    %1101 = vmatprep.subr.mxu0 0.0
    %1102 = vmatpush1.msra.mxu0 0.0
    %1103 = vmatprep.subr.mxu0 0.0
    %1104 = vmatpush1.msra.mxu0 0.0
    %1105 = vmatprep.subr.mxu0 0.0
    %1106 = vmatpush1.msra.mxu0 0.0
    %1107 = vmatprep.subr.mxu0 0.0
    %1108 = vmatpush1.msra.mxu0 0.0
    %1109 = vmatprep.subr.mxu0 0.0
    %1110 = vmatpush1.msra.mxu0 0.0
    %1111 = vmatprep.subr.mxu0 0.0
    %1112 = vmatpush1.msra.mxu0 0.0
    %1113 = vmatprep.subr.mxu0 0.0
    %1114 = vmatpush1.msra.mxu0 0.0
    %1115 = vmatprep.subr.mxu0 0.0
    %1116 = vmatpush1.msra.mxu0 0.0
    %1117 = vmatprep.subr.mxu0 0.0
    %1118 = vmatpush1.msra.mxu0 0.0
    %1119 = vmatprep.subr.mxu0 0.0
    %1120 = vmatpush1.msra.mxu0 0.0
    %1121 = vmatprep.subr.mxu0 0.0
    %1122 = vmatpush1.msra.mxu0 0.0
    %1123 = vmatprep.subr.mxu0 0.0
    %1124 = vmatpush1.msra.mxu0 0.0
    %1125 = vmatprep.subr.mxu0 0.0
    %1126 = vmatpush1.msra.mxu0 0.0
    %1127 = vmatprep.subr.mxu0 0.0
    %1128 = vmatpush1.msra.mxu0 0.0
    %1129 = vmatprep.subr.mxu0 0.0
    %1130 = vmatpush1.msra.mxu0 0.0
    %1131 = vmatprep.subr.mxu0 0.0
    %1132 = vmatpush1.msra.mxu0 0.0
    %1133 = vmatprep.subr.mxu0 0.0
    %1134 = vmatpush1.msra.mxu0 0.0
    %1135 = vmatprep.subr.mxu0 0.0
    %1136 = vmatpush1.msra.mxu0 0.0
    %1137 = vmatprep.subr.mxu0 0.0
    %1138 = vmatpush1.msra.mxu0 0.0
    %1139 = vmatprep.subr.mxu0 0.0
    %1140 = vmatpush1.msra.mxu0 0.0
    %1141 = vmatprep.subr.mxu0 0.0
    %1142 = vmatpush1.msra.mxu0 0.0
    %1143 = vmatprep.subr.mxu0 0.0
    %1144 = vmatpush1.msra.mxu0 0.0
    %1145 = vmatprep.subr.mxu0 0.0
    %1146 = vmatpush1.msra.mxu0 0.0
    %1147 = vmatprep.mubr.f32.mxu0 0.0
    %1148 = vmatmul.mubr.f32.gmra.mrb[0].mxu0 %v999
    %v1149 = vpop.f32.mrb[0].mxu0
    %v1150 = vadd.f32 0.0, %v1149
    %v1151 = vpop.f32.mrb[0].mxu0
    %1152 = vdwg.mxu0
    %v1153 = vadd.f32 %v159, %v1150
    %v1154 = vxor.u32 %v1153, 2147483648
    %v1155 = vmul.f32 %v1154, 1.442695
    %v1156 = vpow.pop %v1155
    %v1157 = vadd.f32 %v1156, 1.0
    %v1158 = vrcp.pop %v1157
    %v1159 = vmul.f32 1.0, %v1158
    %1160 = vmatprep.subr.mxu0 0.0
    %1161 = vmatpush1.msra.mxu0 %v45
    %1162 = vmatprep.subr.mxu0 0.0
    %1163 = vmatpush1.msra.mxu0 %v46
    %1164 = vmatprep.subr.mxu0 0.0
    %1165 = vmatpush1.msra.mxu0 %v47
    %1166 = vmatprep.subr.mxu0 0.0
    %1167 = vmatpush1.msra.mxu0 %v48
    %1168 = vmatprep.subr.mxu0 0.0
    %1169 = vmatpush1.msra.mxu0 0.0
    %1170 = vmatprep.subr.mxu0 0.0
    %1171 = vmatpush1.msra.mxu0 0.0
    %1172 = vmatprep.subr.mxu0 0.0
    %1173 = vmatpush1.msra.mxu0 0.0
    %1174 = vmatprep.subr.mxu0 0.0
    %1175 = vmatpush1.msra.mxu0 0.0
    %1176 = vmatprep.subr.mxu0 0.0
    %1177 = vmatpush1.msra.mxu0 0.0
    %1178 = vmatprep.subr.mxu0 0.0
    %1179 = vmatpush1.msra.mxu0 0.0
    %1180 = vmatprep.subr.mxu0 0.0
    %1181 = vmatpush1.msra.mxu0 0.0
    %1182 = vmatprep.subr.mxu0 0.0
    %1183 = vmatpush1.msra.mxu0 0.0
    %1184 = vmatprep.subr.mxu0 0.0
    %1185 = vmatpush1.msra.mxu0 0.0
    %1186 = vmatprep.subr.mxu0 0.0
    %1187 = vmatpush1.msra.mxu0 0.0
    %1188 = vmatprep.subr.mxu0 0.0
    %1189 = vmatpush1.msra.mxu0 0.0
    %1190 = vmatprep.subr.mxu0 0.0
    %1191 = vmatpush1.msra.mxu0 0.0
    %1192 = vmatprep.subr.mxu0 0.0
    %1193 = vmatpush1.msra.mxu0 0.0
    %1194 = vmatprep.subr.mxu0 0.0
    %1195 = vmatpush1.msra.mxu0 0.0
    %1196 = vmatprep.subr.mxu0 0.0
    %1197 = vmatpush1.msra.mxu0 0.0
    %1198 = vmatprep.subr.mxu0 0.0
    %1199 = vmatpush1.msra.mxu0 0.0
    %1200 = vmatprep.subr.mxu0 0.0
    %1201 = vmatpush1.msra.mxu0 0.0
    %1202 = vmatprep.subr.mxu0 0.0
    %1203 = vmatpush1.msra.mxu0 0.0
    %1204 = vmatprep.subr.mxu0 0.0
    %1205 = vmatpush1.msra.mxu0 0.0
    %1206 = vmatprep.subr.mxu0 0.0
    %1207 = vmatpush1.msra.mxu0 0.0
    %1208 = vmatprep.subr.mxu0 0.0
    %1209 = vmatpush1.msra.mxu0 0.0
    %1210 = vmatprep.subr.mxu0 0.0
    %1211 = vmatpush1.msra.mxu0 0.0
    %1212 = vmatprep.subr.mxu0 0.0
    %1213 = vmatpush1.msra.mxu0 0.0
    %1214 = vmatprep.subr.mxu0 0.0
    %1215 = vmatpush1.msra.mxu0 0.0
    %1216 = vmatprep.subr.mxu0 0.0
    %1217 = vmatpush1.msra.mxu0 0.0
    %1218 = vmatprep.subr.mxu0 0.0
    %1219 = vmatpush1.msra.mxu0 0.0
    %1220 = vmatprep.subr.mxu0 0.0
    %1221 = vmatpush1.msra.mxu0 0.0
    %1222 = vmatprep.subr.mxu0 0.0
    %1223 = vmatpush1.msra.mxu0 0.0
    %1224 = vmatprep.mubr.f32.mxu0 0.0
    %1225 = vmatmul.mubr.f32.gmra.mrb[0].mxu0 %v999
    %v1226 = vpop.f32.mrb[0].mxu0
    %v1227 = vadd.f32 0.0, %v1226
    %v1228 = vpop.f32.mrb[0].mxu0
    %1229 = vdwg.mxu0
    %v1230 = vadd.f32 %v233, %v1227
    %v1231 = vxor.u32 %v1230, 2147483648
    %v1232 = vmul.f32 %v1231, 1.442695
    %v1233 = vpow.pop %v1232
    %v1234 = vadd.f32 %v1233, 1.0
    %v1235 = vrcp.pop %v1234
    %v1236 = vmul.f32 1.0, %v1235
    %1237 = vmatprep.subr.mxu0 0.0
    %1238 = vmatpush1.msra.mxu0 %v49
    %1239 = vmatprep.subr.mxu0 0.0
    %1240 = vmatpush1.msra.mxu0 %v50
    %1241 = vmatprep.subr.mxu0 0.0
    %1242 = vmatpush1.msra.mxu0 %v51
    %1243 = vmatprep.subr.mxu0 0.0
    %1244 = vmatpush1.msra.mxu0 %v52
    %1245 = vmatprep.subr.mxu0 0.0
    %1246 = vmatpush1.msra.mxu0 0.0
    %1247 = vmatprep.subr.mxu0 0.0
    %1248 = vmatpush1.msra.mxu0 0.0
    %1249 = vmatprep.subr.mxu0 0.0
    %1250 = vmatpush1.msra.mxu0 0.0
    %1251 = vmatprep.subr.mxu0 0.0
    %1252 = vmatpush1.msra.mxu0 0.0
    %1253 = vmatprep.subr.mxu0 0.0
    %1254 = vmatpush1.msra.mxu0 0.0
    %1255 = vmatprep.subr.mxu0 0.0
    %1256 = vmatpush1.msra.mxu0 0.0
    %1257 = vmatprep.subr.mxu0 0.0
    %1258 = vmatpush1.msra.mxu0 0.0
    %1259 = vmatprep.subr.mxu0 0.0
    %1260 = vmatpush1.msra.mxu0 0.0
    %1261 = vmatprep.subr.mxu0 0.0
    %1262 = vmatpush1.msra.mxu0 0.0
    %1263 = vmatprep.subr.mxu0 0.0
    %1264 = vmatpush1.msra.mxu0 0.0
    %1265 = vmatprep.subr.mxu0 0.0
    %1266 = vmatpush1.msra.mxu0 0.0
    %1267 = vmatprep.subr.mxu0 0.0
    %1268 = vmatpush1.msra.mxu0 0.0
    %1269 = vmatprep.subr.mxu0 0.0
    %1270 = vmatpush1.msra.mxu0 0.0
    %1271 = vmatprep.subr.mxu0 0.0
    %1272 = vmatpush1.msra.mxu0 0.0
    %1273 = vmatprep.subr.mxu0 0.0
    %1274 = vmatpush1.msra.mxu0 0.0
    %1275 = vmatprep.subr.mxu0 0.0
    %1276 = vmatpush1.msra.mxu0 0.0
    %1277 = vmatprep.subr.mxu0 0.0
    %1278 = vmatpush1.msra.mxu0 0.0
    %1279 = vmatprep.subr.mxu0 0.0
    %1280 = vmatpush1.msra.mxu0 0.0
    %1281 = vmatprep.subr.mxu0 0.0
    %1282 = vmatpush1.msra.mxu0 0.0
    %1283 = vmatprep.subr.mxu0 0.0
    %1284 = vmatpush1.msra.mxu0 0.0
    %1285 = vmatprep.subr.mxu0 0.0
    %1286 = vmatpush1.msra.mxu0 0.0
    %1287 = vmatprep.subr.mxu0 0.0
    %1288 = vmatpush1.msra.mxu0 0.0
    %1289 = vmatprep.subr.mxu0 0.0
    %1290 = vmatpush1.msra.mxu0 0.0
    %1291 = vmatprep.subr.mxu0 0.0
    %1292 = vmatpush1.msra.mxu0 0.0
    %1293 = vmatprep.subr.mxu0 0.0
    %1294 = vmatpush1.msra.mxu0 0.0
    %1295 = vmatprep.subr.mxu0 0.0
    %1296 = vmatpush1.msra.mxu0 0.0
    %1297 = vmatprep.subr.mxu0 0.0
    %1298 = vmatpush1.msra.mxu0 0.0
    %1299 = vmatprep.subr.mxu0 0.0
    %1300 = vmatpush1.msra.mxu0 0.0
    %1301 = vmatprep.mubr.f32.mxu0 0.0
    %1302 = vmatmul.mubr.f32.gmra.mrb[0].mxu0 %v999
    %v1303 = vpop.f32.mrb[0].mxu0
    %v1304 = vadd.f32 0.0, %v1303
    %v1305 = vpop.f32.mrb[0].mxu0
    %1306 = vdwg.mxu0
    %v1307 = vadd.f32 %v307, %v1304
    %v1308 = vtanh.pop %v1307
    %1309 = vmatprep.subr.mxu0 0.0
    %1310 = vmatpush1.msra.mxu0 %v53
    %1311 = vmatprep.subr.mxu0 0.0
    %1312 = vmatpush1.msra.mxu0 %v54
    %1313 = vmatprep.subr.mxu0 0.0
    %1314 = vmatpush1.msra.mxu0 %v55
    %1315 = vmatprep.subr.mxu0 0.0
    %1316 = vmatpush1.msra.mxu0 %v56
    %1317 = vmatprep.subr.mxu0 0.0
    %1318 = vmatpush1.msra.mxu0 0.0
    %1319 = vmatprep.subr.mxu0 0.0
    %1320 = vmatpush1.msra.mxu0 0.0
    %1321 = vmatprep.subr.mxu0 0.0
    %1322 = vmatpush1.msra.mxu0 0.0
    %1323 = vmatprep.subr.mxu0 0.0
    %1324 = vmatpush1.msra.mxu0 0.0
    %1325 = vmatprep.subr.mxu0 0.0
    %1326 = vmatpush1.msra.mxu0 0.0
    %1327 = vmatprep.subr.mxu0 0.0
    %1328 = vmatpush1.msra.mxu0 0.0
    %1329 = vmatprep.subr.mxu0 0.0
    %1330 = vmatpush1.msra.mxu0 0.0
    %1331 = vmatprep.subr.mxu0 0.0
    %1332 = vmatpush1.msra.mxu0 0.0
    %1333 = vmatprep.subr.mxu0 0.0
    %1334 = vmatpush1.msra.mxu0 0.0
    %1335 = vmatprep.subr.mxu0 0.0
    %1336 = vmatpush1.msra.mxu0 0.0
    %1337 = vmatprep.subr.mxu0 0.0
    %1338 = vmatpush1.msra.mxu0 0.0
    %1339 = vmatprep.subr.mxu0 0.0
    %1340 = vmatpush1.msra.mxu0 0.0
    %1341 = vmatprep.subr.mxu0 0.0
    %1342 = vmatpush1.msra.mxu0 0.0
    %1343 = vmatprep.subr.mxu0 0.0
    %1344 = vmatpush1.msra.mxu0 0.0
    %1345 = vmatprep.subr.mxu0 0.0
    %1346 = vmatpush1.msra.mxu0 0.0
    %1347 = vmatprep.subr.mxu0 0.0
    %1348 = vmatpush1.msra.mxu0 0.0
    %1349 = vmatprep.subr.mxu0 0.0
    %1350 = vmatpush1.msra.mxu0 0.0
    %1351 = vmatprep.subr.mxu0 0.0
    %1352 = vmatpush1.msra.mxu0 0.0
    %1353 = vmatprep.subr.mxu0 0.0
    %1354 = vmatpush1.msra.mxu0 0.0
    %1355 = vmatprep.subr.mxu0 0.0
    %1356 = vmatpush1.msra.mxu0 0.0
    %1357 = vmatprep.subr.mxu0 0.0
    %1358 = vmatpush1.msra.mxu0 0.0
    %1359 = vmatprep.subr.mxu0 0.0
    %1360 = vmatpush1.msra.mxu0 0.0
    %1361 = vmatprep.subr.mxu0 0.0
    %1362 = vmatpush1.msra.mxu0 0.0
    %1363 = vmatprep.subr.mxu0 0.0
    %1364 = vmatpush1.msra.mxu0 0.0
    %1365 = vmatprep.subr.mxu0 0.0
    %1366 = vmatpush1.msra.mxu0 0.0
    %1367 = vmatprep.subr.mxu0 0.0
    %1368 = vmatpush1.msra.mxu0 0.0
    %1369 = vmatprep.subr.mxu0 0.0
    %1370 = vmatpush1.msra.mxu0 0.0
    %1371 = vmatprep.subr.mxu0 0.0
    %1372 = vmatpush1.msra.mxu0 0.0
    %1373 = vmatprep.mubr.f32.mxu0 0.0
    %1374 = vmatmul.mubr.f32.gmra.mrb[0].mxu0 %v999
    %v1375 = vpop.f32.mrb[0].mxu0
    %v1376 = vadd.f32 0.0, %v1375
    %v1377 = vpop.f32.mrb[0].mxu0
    %1378 = vdwg.mxu0
    %v1379 = vadd.f32 %v381, %v1376
    %v1380 = vxor.u32 %v1379, 2147483648
    %v1381 = vmul.f32 %v1380, 1.442695
    %v1382 = vpow.pop %v1381
    %v1383 = vadd.f32 %v1382, 1.0
    %v1384 = vrcp.pop %v1383
    %v1385 = vmul.f32 1.0, %v1384
    %v1386 = vmul.f32 %v1236, %v991
    %v1387 = vmul.f32 %v1159, %v1308
    %v1388 = vadd.f32 %v1386, %v1387
    %v1389 = vtanh.pop %v1388
    %v1390 = vmul.f32 %v1385, %v1389
    %v1392 = vsel %vm88, %v1390, 0
    %1394 = vmatprep.subr.mxu0 0.0
    %1395 = vmatpush1.msra.mxu0 %v73
    %1396 = vmatprep.subr.mxu0 0.0
    %1397 = vmatpush1.msra.mxu0 %v74
    %1398 = vmatprep.subr.mxu0 0.0
    %1399 = vmatpush1.msra.mxu0 %v75
    %1400 = vmatprep.subr.mxu0 0.0
    %1401 = vmatpush1.msra.mxu0 %v76
    %1402 = vmatprep.subr.mxu0 0.0
    %1403 = vmatpush1.msra.mxu0 0.0
    %1404 = vmatprep.subr.mxu0 0.0
    %1405 = vmatpush1.msra.mxu0 0.0
    %1406 = vmatprep.subr.mxu0 0.0
    %1407 = vmatpush1.msra.mxu0 0.0
    %1408 = vmatprep.subr.mxu0 0.0
    %1409 = vmatpush1.msra.mxu0 0.0
    %1410 = vmatprep.subr.mxu0 0.0
    %1411 = vmatpush1.msra.mxu0 0.0
    %1412 = vmatprep.subr.mxu0 0.0
    %1413 = vmatpush1.msra.mxu0 0.0
    %1414 = vmatprep.subr.mxu0 0.0
    %1415 = vmatpush1.msra.mxu0 0.0
    %1416 = vmatprep.subr.mxu0 0.0
    %1417 = vmatpush1.msra.mxu0 0.0
    %1418 = vmatprep.subr.mxu0 0.0
    %1419 = vmatpush1.msra.mxu0 0.0
    %1420 = vmatprep.subr.mxu0 0.0
    %1421 = vmatpush1.msra.mxu0 0.0
    %1422 = vmatprep.subr.mxu0 0.0
    %1423 = vmatpush1.msra.mxu0 0.0
    %1424 = vmatprep.subr.mxu0 0.0
    %1425 = vmatpush1.msra.mxu0 0.0
    %1426 = vmatprep.subr.mxu0 0.0
    %1427 = vmatpush1.msra.mxu0 0.0
    %1428 = vmatprep.subr.mxu0 0.0
    %1429 = vmatpush1.msra.mxu0 0.0
    %1430 = vmatprep.subr.mxu0 0.0
    %1431 = vmatpush1.msra.mxu0 0.0
    %1432 = vmatprep.subr.mxu0 0.0
    %1433 = vmatpush1.msra.mxu0 0.0
    %1434 = vmatprep.subr.mxu0 0.0
    %1435 = vmatpush1.msra.mxu0 0.0
    %1436 = vmatprep.subr.mxu0 0.0
    %1437 = vmatpush1.msra.mxu0 0.0
    %1438 = vmatprep.subr.mxu0 0.0
    %1439 = vmatpush1.msra.mxu0 0.0
    %1440 = vmatprep.subr.mxu0 0.0
    %1441 = vmatpush1.msra.mxu0 0.0
    %1442 = vmatprep.subr.mxu0 0.0
    %1443 = vmatpush1.msra.mxu0 0.0
    %1444 = vmatprep.subr.mxu0 0.0
    %1445 = vmatpush1.msra.mxu0 0.0
    %1446 = vmatprep.subr.mxu0 0.0
    %1447 = vmatpush1.msra.mxu0 0.0
    %1448 = vmatprep.subr.mxu0 0.0
    %1449 = vmatpush1.msra.mxu0 0.0
    %1450 = vmatprep.subr.mxu0 0.0
    %1451 = vmatpush1.msra.mxu0 0.0
    %1452 = vmatprep.subr.mxu0 0.0
    %1453 = vmatpush1.msra.mxu0 0.0
    %1454 = vmatprep.subr.mxu0 0.0
    %1455 = vmatpush1.msra.mxu0 0.0
    %1456 = vmatprep.subr.mxu0 0.0
    %1457 = vmatpush1.msra.mxu0 0.0
    %1458 = vmatprep.mubr.f32.mxu0 0.0
    %1459 = vmatmul.mubr.f32.gmra.mrb[0].mxu0 %v1392
    %v1460 = vpop.f32.mrb[0].mxu0
    %v1461 = vadd.f32 %v997, %v1460
    %v1462 = vpop.f32.mrb[0].mxu0
    %1463 = vdwg.mxu0
    %1464 = vst [vmem:[%s3 + $0x2] sm:$0x3] %v1461
    %v1465 = vmul.f32 %v1390, %v993
    %v1466 = vsel %vm1073, %v1465, 0.0
    %1467 = vadd.xlane.f32.xlu0 %v1466
    %v1468 = vpop.xlane.xlu0 %1467
    %v1469 = vmul.f32 %v1390, %v1390
    %v1470 = vsel %vm1073, %v1469, 0.0
    %1471 = vadd.xlane.f32.xlu0 %v1470
    %v1472 = vpop.xlane.xlu0 %1471
    %v1473 = vmax.f32 %v1468, %v1472
    %v1474 = vsub.f32 %v1468, %v1473
    %v1475 = vmul.f32 %v1474, 1.442695
    %v1476 = vpow.pop %v1475
    %v1477 = vsub.f32 %v1472, %v1473
    %v1478 = vmul.f32 %v1477, 1.442695
    %v1479 = vpow.pop %v1478
    %v1480 = vadd.f32 %v1476, %v1479
    %v1481 = vmul.f32 %v1476, %v682
    %v1482 = vmul.f32 %v1479, %v1082
    %v1483 = vadd.f32 %v1481, %v1482
    %v1484 = vrcp.pop %v1480
    %v1485 = vmul.f32 %v1483, %v1484
    %1486 = vmatprep.subr.mxu0 0.0
    %1487 = vmatpush1.msra.mxu0 %v41
    %1488 = vmatprep.subr.mxu0 0.0
    %1489 = vmatpush1.msra.mxu0 %v42
    %1490 = vmatprep.subr.mxu0 0.0
    %1491 = vmatpush1.msra.mxu0 %v43
    %1492 = vmatprep.subr.mxu0 0.0
    %1493 = vmatpush1.msra.mxu0 %v44
    %1494 = vmatprep.subr.mxu0 0.0
    %1495 = vmatpush1.msra.mxu0 0.0
    %1496 = vmatprep.subr.mxu0 0.0
    %1497 = vmatpush1.msra.mxu0 0.0
    %1498 = vmatprep.subr.mxu0 0.0
    %1499 = vmatpush1.msra.mxu0 0.0
    %1500 = vmatprep.subr.mxu0 0.0
    %1501 = vmatpush1.msra.mxu0 0.0
    %1502 = vmatprep.subr.mxu0 0.0
    %1503 = vmatpush1.msra.mxu0 0.0
    %1504 = vmatprep.subr.mxu0 0.0
    %1505 = vmatpush1.msra.mxu0 0.0
    %1506 = vmatprep.subr.mxu0 0.0
    %1507 = vmatpush1.msra.mxu0 0.0
    %1508 = vmatprep.subr.mxu0 0.0
    %1509 = vmatpush1.msra.mxu0 0.0
    %1510 = vmatprep.subr.mxu0 0.0
    %1511 = vmatpush1.msra.mxu0 0.0
    %1512 = vmatprep.subr.mxu0 0.0
    %1513 = vmatpush1.msra.mxu0 0.0
    %1514 = vmatprep.subr.mxu0 0.0
    %1515 = vmatpush1.msra.mxu0 0.0
    %1516 = vmatprep.subr.mxu0 0.0
    %1517 = vmatpush1.msra.mxu0 0.0
    %1518 = vmatprep.subr.mxu0 0.0
    %1519 = vmatpush1.msra.mxu0 0.0
    %1520 = vmatprep.subr.mxu0 0.0
    %1521 = vmatpush1.msra.mxu0 0.0
    %1522 = vmatprep.subr.mxu0 0.0
    %1523 = vmatpush1.msra.mxu0 0.0
    %1524 = vmatprep.subr.mxu0 0.0
    %1525 = vmatpush1.msra.mxu0 0.0
    %1526 = vmatprep.subr.mxu0 0.0
    %1527 = vmatpush1.msra.mxu0 0.0
    %1528 = vmatprep.subr.mxu0 0.0
    %1529 = vmatpush1.msra.mxu0 0.0
    %1530 = vmatprep.subr.mxu0 0.0
    %1531 = vmatpush1.msra.mxu0 0.0
    %1532 = vmatprep.subr.mxu0 0.0
    %1533 = vmatpush1.msra.mxu0 0.0
    %1534 = vmatprep.subr.mxu0 0.0
    %1535 = vmatpush1.msra.mxu0 0.0
    %1536 = vmatprep.subr.mxu0 0.0
    %1537 = vmatpush1.msra.mxu0 0.0
    %1538 = vmatprep.subr.mxu0 0.0
    %1539 = vmatpush1.msra.mxu0 0.0
    %1540 = vmatprep.subr.mxu0 0.0
    %1541 = vmatpush1.msra.mxu0 0.0
    %1542 = vmatprep.subr.mxu0 0.0
    %1543 = vmatpush1.msra.mxu0 0.0
    %1544 = vmatprep.subr.mxu0 0.0
    %1545 = vmatpush1.msra.mxu0 0.0
    %1546 = vmatprep.subr.mxu0 0.0
    %1547 = vmatpush1.msra.mxu0 0.0
    %1548 = vmatprep.subr.mxu0 0.0
    %1549 = vmatpush1.msra.mxu0 0.0
    %1550 = vmatprep.mubr.f32.mxu0 0.0
    %1551 = vmatmul.mubr.f32.gmra.mrb[0].mxu0 %v1392
    %v1552 = vpop.f32.mrb[0].mxu0
    %v1553 = vadd.f32 0.0, %v1552
    %v1554 = vpop.f32.mrb[0].mxu0
    %1555 = vdwg.mxu0
    %v1556 = vadd.f32 %v159, %v1553
    %v1557 = vxor.u32 %v1556, 2147483648
    %v1558 = vmul.f32 %v1557, 1.442695
    %v1559 = vpow.pop %v1558
    %v1560 = vadd.f32 %v1559, 1.0
    %v1561 = vrcp.pop %v1560
    %v1562 = vmul.f32 1.0, %v1561
    %1563 = vmatprep.subr.mxu0 0.0
    %1564 = vmatpush1.msra.mxu0 %v45
    %1565 = vmatprep.subr.mxu0 0.0
    %1566 = vmatpush1.msra.mxu0 %v46
    %1567 = vmatprep.subr.mxu0 0.0
    %1568 = vmatpush1.msra.mxu0 %v47
    %1569 = vmatprep.subr.mxu0 0.0
    %1570 = vmatpush1.msra.mxu0 %v48
    %1571 = vmatprep.subr.mxu0 0.0
    %1572 = vmatpush1.msra.mxu0 0.0
    %1573 = vmatprep.subr.mxu0 0.0
    %1574 = vmatpush1.msra.mxu0 0.0
    %1575 = vmatprep.subr.mxu0 0.0
    %1576 = vmatpush1.msra.mxu0 0.0
    %1577 = vmatprep.subr.mxu0 0.0
    %1578 = vmatpush1.msra.mxu0 0.0
    %1579 = vmatprep.subr.mxu0 0.0
    %1580 = vmatpush1.msra.mxu0 0.0
    %1581 = vmatprep.subr.mxu0 0.0
    %1582 = vmatpush1.msra.mxu0 0.0
    %1583 = vmatprep.subr.mxu0 0.0
    %1584 = vmatpush1.msra.mxu0 0.0
    %1585 = vmatprep.subr.mxu0 0.0
    %1586 = vmatpush1.msra.mxu0 0.0
    %1587 = vmatprep.subr.mxu0 0.0
    %1588 = vmatpush1.msra.mxu0 0.0
    %1589 = vmatprep.subr.mxu0 0.0
    %1590 = vmatpush1.msra.mxu0 0.0
    %1591 = vmatprep.subr.mxu0 0.0
    %1592 = vmatpush1.msra.mxu0 0.0
    %1593 = vmatprep.subr.mxu0 0.0
    %1594 = vmatpush1.msra.mxu0 0.0
    %1595 = vmatprep.subr.mxu0 0.0
    %1596 = vmatpush1.msra.mxu0 0.0
    %1597 = vmatprep.subr.mxu0 0.0
    %1598 = vmatpush1.msra.mxu0 0.0
    %1599 = vmatprep.subr.mxu0 0.0
    %1600 = vmatpush1.msra.mxu0 0.0
    %1601 = vmatprep.subr.mxu0 0.0
    %1602 = vmatpush1.msra.mxu0 0.0
    %1603 = vmatprep.subr.mxu0 0.0
    %1604 = vmatpush1.msra.mxu0 0.0
    %1605 = vmatprep.subr.mxu0 0.0
    %1606 = vmatpush1.msra.mxu0 0.0
    %1607 = vmatprep.subr.mxu0 0.0
    %1608 = vmatpush1.msra.mxu0 0.0
    %1609 = vmatprep.subr.mxu0 0.0
    %1610 = vmatpush1.msra.mxu0 0.0
    %1611 = vmatprep.subr.mxu0 0.0
    %1612 = vmatpush1.msra.mxu0 0.0
    %1613 = vmatprep.subr.mxu0 0.0
    %1614 = vmatpush1.msra.mxu0 0.0
    %1615 = vmatprep.subr.mxu0 0.0
    %1616 = vmatpush1.msra.mxu0 0.0
    %1617 = vmatprep.subr.mxu0 0.0
    %1618 = vmatpush1.msra.mxu0 0.0
    %1619 = vmatprep.subr.mxu0 0.0
    %1620 = vmatpush1.msra.mxu0 0.0
    %1621 = vmatprep.subr.mxu0 0.0
    %1622 = vmatpush1.msra.mxu0 0.0
    %1623 = vmatprep.subr.mxu0 0.0
    %1624 = vmatpush1.msra.mxu0 0.0
    %1625 = vmatprep.subr.mxu0 0.0
    %1626 = vmatpush1.msra.mxu0 0.0
    %1627 = vmatprep.mubr.f32.mxu0 0.0
    %1628 = vmatmul.mubr.f32.gmra.mrb[0].mxu0 %v1392
    %v1629 = vpop.f32.mrb[0].mxu0
    %v1630 = vadd.f32 0.0, %v1629
    %v1631 = vpop.f32.mrb[0].mxu0
    %1632 = vdwg.mxu0
    %v1633 = vadd.f32 %v233, %v1630
    %v1634 = vxor.u32 %v1633, 2147483648
    %v1635 = vmul.f32 %v1634, 1.442695
    %v1636 = vpow.pop %v1635
    %v1637 = vadd.f32 %v1636, 1.0
    %v1638 = vrcp.pop %v1637
    %v1639 = vmul.f32 1.0, %v1638
    %1640 = vmatprep.subr.mxu0 0.0
    %1641 = vmatpush1.msra.mxu0 %v49
    %1642 = vmatprep.subr.mxu0 0.0
    %1643 = vmatpush1.msra.mxu0 %v50
    %1644 = vmatprep.subr.mxu0 0.0
    %1645 = vmatpush1.msra.mxu0 %v51
    %1646 = vmatprep.subr.mxu0 0.0
    %1647 = vmatpush1.msra.mxu0 %v52
    %1648 = vmatprep.subr.mxu0 0.0
    %1649 = vmatpush1.msra.mxu0 0.0
    %1650 = vmatprep.subr.mxu0 0.0
    %1651 = vmatpush1.msra.mxu0 0.0
    %1652 = vmatprep.subr.mxu0 0.0
    %1653 = vmatpush1.msra.mxu0 0.0
    %1654 = vmatprep.subr.mxu0 0.0
    %1655 = vmatpush1.msra.mxu0 0.0
    %1656 = vmatprep.subr.mxu0 0.0
    %1657 = vmatpush1.msra.mxu0 0.0
    %1658 = vmatprep.subr.mxu0 0.0
    %1659 = vmatpush1.msra.mxu0 0.0
    %1660 = vmatprep.subr.mxu0 0.0
    %1661 = vmatpush1.msra.mxu0 0.0
    %1662 = vmatprep.subr.mxu0 0.0
    %1663 = vmatpush1.msra.mxu0 0.0
    %1664 = vmatprep.subr.mxu0 0.0
    %1665 = vmatpush1.msra.mxu0 0.0
    %1666 = vmatprep.subr.mxu0 0.0
    %1667 = vmatpush1.msra.mxu0 0.0
    %1668 = vmatprep.subr.mxu0 0.0
    %1669 = vmatpush1.msra.mxu0 0.0
    %1670 = vmatprep.subr.mxu0 0.0
    %1671 = vmatpush1.msra.mxu0 0.0
    %1672 = vmatprep.subr.mxu0 0.0
    %1673 = vmatpush1.msra.mxu0 0.0
    %1674 = vmatprep.subr.mxu0 0.0
    %1675 = vmatpush1.msra.mxu0 0.0
    %1676 = vmatprep.subr.mxu0 0.0
    %1677 = vmatpush1.msra.mxu0 0.0
    %1678 = vmatprep.subr.mxu0 0.0
    %1679 = vmatpush1.msra.mxu0 0.0
    %1680 = vmatprep.subr.mxu0 0.0
    %1681 = vmatpush1.msra.mxu0 0.0
    %1682 = vmatprep.subr.mxu0 0.0
    %1683 = vmatpush1.msra.mxu0 0.0
    %1684 = vmatprep.subr.mxu0 0.0
    %1685 = vmatpush1.msra.mxu0 0.0
    %1686 = vmatprep.subr.mxu0 0.0
    %1687 = vmatpush1.msra.mxu0 0.0
    %1688 = vmatprep.subr.mxu0 0.0
    %1689 = vmatpush1.msra.mxu0 0.0
    %1690 = vmatprep.subr.mxu0 0.0
    %1691 = vmatpush1.msra.mxu0 0.0
    %1692 = vmatprep.subr.mxu0 0.0
    %1693 = vmatpush1.msra.mxu0 0.0
    %1694 = vmatprep.subr.mxu0 0.0
    %1695 = vmatpush1.msra.mxu0 0.0
    %1696 = vmatprep.subr.mxu0 0.0
    %1697 = vmatpush1.msra.mxu0 0.0
    %1698 = vmatprep.subr.mxu0 0.0
    %1699 = vmatpush1.msra.mxu0 0.0
    %1700 = vmatprep.subr.mxu0 0.0
    %1701 = vmatpush1.msra.mxu0 0.0
    %1702 = vmatprep.subr.mxu0 0.0
    %1703 = vmatpush1.msra.mxu0 0.0
    %1704 = vmatprep.mubr.f32.mxu0 0.0
    %1705 = vmatmul.mubr.f32.gmra.mrb[0].mxu0 %v1392
    %v1706 = vpop.f32.mrb[0].mxu0
    %v1707 = vadd.f32 0.0, %v1706
    %v1708 = vpop.f32.mrb[0].mxu0
    %1709 = vdwg.mxu0
    %v1710 = vadd.f32 %v307, %v1707
    %v1711 = vtanh.pop %v1710
    %1712 = vmatprep.subr.mxu0 0.0
    %1713 = vmatpush1.msra.mxu0 %v53
    %1714 = vmatprep.subr.mxu0 0.0
    %1715 = vmatpush1.msra.mxu0 %v54
    %1716 = vmatprep.subr.mxu0 0.0
    %1717 = vmatpush1.msra.mxu0 %v55
    %1718 = vmatprep.subr.mxu0 0.0
    %1719 = vmatpush1.msra.mxu0 %v56
    %1720 = vmatprep.subr.mxu0 0.0
    %1721 = vmatpush1.msra.mxu0 0.0
    %1722 = vmatprep.subr.mxu0 0.0
    %1723 = vmatpush1.msra.mxu0 0.0
    %1724 = vmatprep.subr.mxu0 0.0
    %1725 = vmatpush1.msra.mxu0 0.0
    %1726 = vmatprep.subr.mxu0 0.0
    %1727 = vmatpush1.msra.mxu0 0.0
    %1728 = vmatprep.subr.mxu0 0.0
    %1729 = vmatpush1.msra.mxu0 0.0
    %1730 = vmatprep.subr.mxu0 0.0
    %1731 = vmatpush1.msra.mxu0 0.0
    %1732 = vmatprep.subr.mxu0 0.0
    %1733 = vmatpush1.msra.mxu0 0.0
    %1734 = vmatprep.subr.mxu0 0.0
    %1735 = vmatpush1.msra.mxu0 0.0
    %1736 = vmatprep.subr.mxu0 0.0
    %1737 = vmatpush1.msra.mxu0 0.0
    %1738 = vmatprep.subr.mxu0 0.0
    %1739 = vmatpush1.msra.mxu0 0.0
    %1740 = vmatprep.subr.mxu0 0.0
    %1741 = vmatpush1.msra.mxu0 0.0
    %1742 = vmatprep.subr.mxu0 0.0
    %1743 = vmatpush1.msra.mxu0 0.0
    %1744 = vmatprep.subr.mxu0 0.0
    %1745 = vmatpush1.msra.mxu0 0.0
    %1746 = vmatprep.subr.mxu0 0.0
    %1747 = vmatpush1.msra.mxu0 0.0
    %1748 = vmatprep.subr.mxu0 0.0
    %1749 = vmatpush1.msra.mxu0 0.0
    %1750 = vmatprep.subr.mxu0 0.0
    %1751 = vmatpush1.msra.mxu0 0.0
    %1752 = vmatprep.subr.mxu0 0.0
    %1753 = vmatpush1.msra.mxu0 0.0
    %1754 = vmatprep.subr.mxu0 0.0
    %1755 = vmatpush1.msra.mxu0 0.0
    %1756 = vmatprep.subr.mxu0 0.0
    %1757 = vmatpush1.msra.mxu0 0.0
    %1758 = vmatprep.subr.mxu0 0.0
    %1759 = vmatpush1.msra.mxu0 0.0
    %1760 = vmatprep.subr.mxu0 0.0
    %1761 = vmatpush1.msra.mxu0 0.0
    %1762 = vmatprep.subr.mxu0 0.0
    %1763 = vmatpush1.msra.mxu0 0.0
    %1764 = vmatprep.subr.mxu0 0.0
    %1765 = vmatpush1.msra.mxu0 0.0
    %1766 = vmatprep.subr.mxu0 0.0
    %1767 = vmatpush1.msra.mxu0 0.0
    %1768 = vmatprep.subr.mxu0 0.0
    %1769 = vmatpush1.msra.mxu0 0.0
    %1770 = vmatprep.subr.mxu0 0.0
    %1771 = vmatpush1.msra.mxu0 0.0
    %1772 = vmatprep.subr.mxu0 0.0
    %1773 = vmatpush1.msra.mxu0 0.0
    %1774 = vmatprep.subr.mxu0 0.0
    %1775 = vmatpush1.msra.mxu0 0.0
    %1776 = vmatprep.mubr.f32.mxu0 0.0
    %1777 = vmatmul.mubr.f32.gmra.mrb[0].mxu0 %v1392
    %v1778 = vpop.f32.mrb[0].mxu0
    %v1779 = vadd.f32 0.0, %v1778
    %v1780 = vpop.f32.mrb[0].mxu0
    %1781 = vdwg.mxu0
    %v1782 = vadd.f32 %v381, %v1779
    %v1783 = vxor.u32 %v1782, 2147483648
    %v1784 = vmul.f32 %v1783, 1.442695
    %v1785 = vpow.pop %v1784
    %v1786 = vadd.f32 %v1785, 1.0
    %v1787 = vrcp.pop %v1786
    %v1788 = vmul.f32 1.0, %v1787
    %v1789 = vmul.f32 %v1639, %v1388
    %v1790 = vmul.f32 %v1562, %v1711
    %v1791 = vadd.f32 %v1789, %v1790
    %v1792 = vtanh.pop %v1791
    %v1793 = vmul.f32 %v1788, %v1792
    %v1795 = vsel %vm88, %v1793, 0
    %1797 = vmatprep.subr.mxu0 0.0
    %1798 = vmatpush1.msra.mxu0 %v73
    %1799 = vmatprep.subr.mxu0 0.0
    %1800 = vmatpush1.msra.mxu0 %v74
    %1801 = vmatprep.subr.mxu0 0.0
    %1802 = vmatpush1.msra.mxu0 %v75
    %1803 = vmatprep.subr.mxu0 0.0
    %1804 = vmatpush1.msra.mxu0 %v76
    %1805 = vmatprep.subr.mxu0 0.0
    %1806 = vmatpush1.msra.mxu0 0.0
    %1807 = vmatprep.subr.mxu0 0.0
    %1808 = vmatpush1.msra.mxu0 0.0
    %1809 = vmatprep.subr.mxu0 0.0
    %1810 = vmatpush1.msra.mxu0 0.0
    %1811 = vmatprep.subr.mxu0 0.0
    %1812 = vmatpush1.msra.mxu0 0.0
    %1813 = vmatprep.subr.mxu0 0.0
    %1814 = vmatpush1.msra.mxu0 0.0
    %1815 = vmatprep.subr.mxu0 0.0
    %1816 = vmatpush1.msra.mxu0 0.0
    %1817 = vmatprep.subr.mxu0 0.0
    %1818 = vmatpush1.msra.mxu0 0.0
    %1819 = vmatprep.subr.mxu0 0.0
    %1820 = vmatpush1.msra.mxu0 0.0
    %1821 = vmatprep.subr.mxu0 0.0
    %1822 = vmatpush1.msra.mxu0 0.0
    %1823 = vmatprep.subr.mxu0 0.0
    %1824 = vmatpush1.msra.mxu0 0.0
    %1825 = vmatprep.subr.mxu0 0.0
    %1826 = vmatpush1.msra.mxu0 0.0
    %1827 = vmatprep.subr.mxu0 0.0
    %1828 = vmatpush1.msra.mxu0 0.0
    %1829 = vmatprep.subr.mxu0 0.0
    %1830 = vmatpush1.msra.mxu0 0.0
    %1831 = vmatprep.subr.mxu0 0.0
    %1832 = vmatpush1.msra.mxu0 0.0
    %1833 = vmatprep.subr.mxu0 0.0
    %1834 = vmatpush1.msra.mxu0 0.0
    %1835 = vmatprep.subr.mxu0 0.0
    %1836 = vmatpush1.msra.mxu0 0.0
    %1837 = vmatprep.subr.mxu0 0.0
    %1838 = vmatpush1.msra.mxu0 0.0
    %1839 = vmatprep.subr.mxu0 0.0
    %1840 = vmatpush1.msra.mxu0 0.0
    %1841 = vmatprep.subr.mxu0 0.0
    %1842 = vmatpush1.msra.mxu0 0.0
    %1843 = vmatprep.subr.mxu0 0.0
    %1844 = vmatpush1.msra.mxu0 0.0
    %1845 = vmatprep.subr.mxu0 0.0
    %1846 = vmatpush1.msra.mxu0 0.0
    %1847 = vmatprep.subr.mxu0 0.0
    %1848 = vmatpush1.msra.mxu0 0.0
    %1849 = vmatprep.subr.mxu0 0.0
    %1850 = vmatpush1.msra.mxu0 0.0
    %1851 = vmatprep.subr.mxu0 0.0
    %1852 = vmatpush1.msra.mxu0 0.0
    %1853 = vmatprep.subr.mxu0 0.0
    %1854 = vmatpush1.msra.mxu0 0.0
    %1855 = vmatprep.subr.mxu0 0.0
    %1856 = vmatpush1.msra.mxu0 0.0
    %1857 = vmatprep.subr.mxu0 0.0
    %1858 = vmatpush1.msra.mxu0 0.0
    %1859 = vmatprep.subr.mxu0 0.0
    %1860 = vmatpush1.msra.mxu0 0.0
    %1861 = vmatprep.mubr.f32.mxu0 0.0
    %1862 = vmatmul.mubr.f32.gmra.mrb[0].mxu0 %v1795
    %v1863 = vpop.f32.mrb[0].mxu0
    %v1864 = vadd.f32 %v997, %v1863
    %v1865 = vpop.f32.mrb[0].mxu0
    %1866 = vdwg.mxu0
    %1867 = vst [vmem:[%s3 + $0x4] sm:$0x3] %v1864
    %v1868 = vmul.f32 %v1793, %v993
    %v1869 = vsel %vm1073, %v1868, 0.0
    %1870 = vadd.xlane.f32.xlu0 %v1869
    %v1871 = vpop.xlane.xlu0 %1870
    %v1872 = vmul.f32 %v1793, %v1390
    %v1873 = vsel %vm1073, %v1872, 0.0
    %1874 = vadd.xlane.f32.xlu0 %v1873
    %v1875 = vpop.xlane.xlu0 %1874
    %v1876 = vmul.f32 %v1793, %v1793
    %v1877 = vsel %vm1073, %v1876, 0.0
    %1878 = vadd.xlane.f32.xlu0 %v1877
    %v1879 = vpop.xlane.xlu0 %1878
    %v1880 = vmax.f32 %v1871, %v1875
    %v1881 = vmax.f32 %v1880, %v1879
    %v1882 = vsub.f32 %v1871, %v1881
    %v1883 = vmul.f32 %v1882, 1.442695
    %v1884 = vpow.pop %v1883
    %v1885 = vsub.f32 %v1875, %v1881
    %v1886 = vmul.f32 %v1885, 1.442695
    %v1887 = vpow.pop %v1886
    %v1888 = vsub.f32 %v1879, %v1881
    %v1889 = vmul.f32 %v1888, 1.442695
    %v1890 = vpow.pop %v1889
    %v1891 = vadd.f32 %v1884, %v1887
    %v1892 = vadd.f32 %v1891, %v1890
    %v1893 = vmul.f32 %v1884, %v682
    %v1894 = vmul.f32 %v1887, %v1082
    %v1895 = vadd.f32 %v1893, %v1894
    %v1896 = vmul.f32 %v1890, %v1485
    %v1897 = vadd.f32 %v1895, %v1896
    %v1898 = vrcp.pop %v1892
    %v1899 = vmul.f32 %v1897, %v1898
    %1900 = vmatprep.subr.mxu0 0.0
    %1901 = vmatpush1.msra.mxu0 %v41
    %1902 = vmatprep.subr.mxu0 0.0
    %1903 = vmatpush1.msra.mxu0 %v42
    %1904 = vmatprep.subr.mxu0 0.0
    %1905 = vmatpush1.msra.mxu0 %v43
    %1906 = vmatprep.subr.mxu0 0.0
    %1907 = vmatpush1.msra.mxu0 %v44
    %1908 = vmatprep.subr.mxu0 0.0
    %1909 = vmatpush1.msra.mxu0 0.0
    %1910 = vmatprep.subr.mxu0 0.0
    %1911 = vmatpush1.msra.mxu0 0.0
    %1912 = vmatprep.subr.mxu0 0.0
    %1913 = vmatpush1.msra.mxu0 0.0
    %1914 = vmatprep.subr.mxu0 0.0
    %1915 = vmatpush1.msra.mxu0 0.0
    %1916 = vmatprep.subr.mxu0 0.0
    %1917 = vmatpush1.msra.mxu0 0.0
    %1918 = vmatprep.subr.mxu0 0.0
    %1919 = vmatpush1.msra.mxu0 0.0
    %1920 = vmatprep.subr.mxu0 0.0
    %1921 = vmatpush1.msra.mxu0 0.0
    %1922 = vmatprep.subr.mxu0 0.0
    %1923 = vmatpush1.msra.mxu0 0.0
    %1924 = vmatprep.subr.mxu0 0.0
    %1925 = vmatpush1.msra.mxu0 0.0
    %1926 = vmatprep.subr.mxu0 0.0
    %1927 = vmatpush1.msra.mxu0 0.0
    %1928 = vmatprep.subr.mxu0 0.0
    %1929 = vmatpush1.msra.mxu0 0.0
    %1930 = vmatprep.subr.mxu0 0.0
    %1931 = vmatpush1.msra.mxu0 0.0
    %1932 = vmatprep.subr.mxu0 0.0
    %1933 = vmatpush1.msra.mxu0 0.0
    %1934 = vmatprep.subr.mxu0 0.0
    %1935 = vmatpush1.msra.mxu0 0.0
    %1936 = vmatprep.subr.mxu0 0.0
    %1937 = vmatpush1.msra.mxu0 0.0
    %1938 = vmatprep.subr.mxu0 0.0
    %1939 = vmatpush1.msra.mxu0 0.0
    %1940 = vmatprep.subr.mxu0 0.0
    %1941 = vmatpush1.msra.mxu0 0.0
    %1942 = vmatprep.subr.mxu0 0.0
    %1943 = vmatpush1.msra.mxu0 0.0
    %1944 = vmatprep.subr.mxu0 0.0
    %1945 = vmatpush1.msra.mxu0 0.0
    %1946 = vmatprep.subr.mxu0 0.0
    %1947 = vmatpush1.msra.mxu0 0.0
    %1948 = vmatprep.subr.mxu0 0.0
    %1949 = vmatpush1.msra.mxu0 0.0
    %1950 = vmatprep.subr.mxu0 0.0
    %1951 = vmatpush1.msra.mxu0 0.0
    %1952 = vmatprep.subr.mxu0 0.0
    %1953 = vmatpush1.msra.mxu0 0.0
    %1954 = vmatprep.subr.mxu0 0.0
    %1955 = vmatpush1.msra.mxu0 0.0
    %1956 = vmatprep.subr.mxu0 0.0
    %1957 = vmatpush1.msra.mxu0 0.0
    %1958 = vmatprep.subr.mxu0 0.0
    %1959 = vmatpush1.msra.mxu0 0.0
    %1960 = vmatprep.subr.mxu0 0.0
    %1961 = vmatpush1.msra.mxu0 0.0
    %1962 = vmatprep.subr.mxu0 0.0
    %1963 = vmatpush1.msra.mxu0 0.0
    %1964 = vmatprep.mubr.f32.mxu0 0.0
    %1965 = vmatmul.mubr.f32.gmra.mrb[0].mxu0 %v1795
    %v1966 = vpop.f32.mrb[0].mxu0
    %v1967 = vadd.f32 0.0, %v1966
    %v1968 = vpop.f32.mrb[0].mxu0
    %1969 = vdwg.mxu0
    %v1970 = vlaneseq
    %v1971 = vshrl.u32 %v1970, 7
    %v1972 = vsub.s32 0, %v1971
    %v1973 = vrot.slane %v454, %v1972
    %v1974 = vadd.f32 %v1973, %v1967
    %v1975 = vxor.u32 %v1974, 2147483648
    %v1976 = vmul.f32 %v1975, 1.442695
    %v1977 = vpow.pop %v1976
    %v1978 = vadd.f32 %v1977, 1.0
    %v1979 = vrcp.pop %v1978
    %v1980 = vmul.f32 1.0, %v1979
    %1981 = vmatprep.subr.mxu0 0.0
    %1982 = vmatpush1.msra.mxu0 %v45
    %1983 = vmatprep.subr.mxu0 0.0
    %1984 = vmatpush1.msra.mxu0 %v46
    %1985 = vmatprep.subr.mxu0 0.0
    %1986 = vmatpush1.msra.mxu0 %v47
    %1987 = vmatprep.subr.mxu0 0.0
    %1988 = vmatpush1.msra.mxu0 %v48
    %1989 = vmatprep.subr.mxu0 0.0
    %1990 = vmatpush1.msra.mxu0 0.0
    %1991 = vmatprep.subr.mxu0 0.0
    %1992 = vmatpush1.msra.mxu0 0.0
    %1993 = vmatprep.subr.mxu0 0.0
    %1994 = vmatpush1.msra.mxu0 0.0
    %1995 = vmatprep.subr.mxu0 0.0
    %1996 = vmatpush1.msra.mxu0 0.0
    %1997 = vmatprep.subr.mxu0 0.0
    %1998 = vmatpush1.msra.mxu0 0.0
    %1999 = vmatprep.subr.mxu0 0.0
    %2000 = vmatpush1.msra.mxu0 0.0
    %2001 = vmatprep.subr.mxu0 0.0
    %2002 = vmatpush1.msra.mxu0 0.0
    %2003 = vmatprep.subr.mxu0 0.0
    %2004 = vmatpush1.msra.mxu0 0.0
    %2005 = vmatprep.subr.mxu0 0.0
    %2006 = vmatpush1.msra.mxu0 0.0
    %2007 = vmatprep.subr.mxu0 0.0
    %2008 = vmatpush1.msra.mxu0 0.0
    %2009 = vmatprep.subr.mxu0 0.0
    %2010 = vmatpush1.msra.mxu0 0.0
    %2011 = vmatprep.subr.mxu0 0.0
    %2012 = vmatpush1.msra.mxu0 0.0
    %2013 = vmatprep.subr.mxu0 0.0
    %2014 = vmatpush1.msra.mxu0 0.0
    %2015 = vmatprep.subr.mxu0 0.0
    %2016 = vmatpush1.msra.mxu0 0.0
    %2017 = vmatprep.subr.mxu0 0.0
    %2018 = vmatpush1.msra.mxu0 0.0
    %2019 = vmatprep.subr.mxu0 0.0
    %2020 = vmatpush1.msra.mxu0 0.0
    %2021 = vmatprep.subr.mxu0 0.0
    %2022 = vmatpush1.msra.mxu0 0.0
    %2023 = vmatprep.subr.mxu0 0.0
    %2024 = vmatpush1.msra.mxu0 0.0
    %2025 = vmatprep.subr.mxu0 0.0
    %2026 = vmatpush1.msra.mxu0 0.0
    %2027 = vmatprep.subr.mxu0 0.0
    %2028 = vmatpush1.msra.mxu0 0.0
    %2029 = vmatprep.subr.mxu0 0.0
    %2030 = vmatpush1.msra.mxu0 0.0
    %2031 = vmatprep.subr.mxu0 0.0
    %2032 = vmatpush1.msra.mxu0 0.0
    %2033 = vmatprep.subr.mxu0 0.0
    %2034 = vmatpush1.msra.mxu0 0.0
    %2035 = vmatprep.subr.mxu0 0.0
    %2036 = vmatpush1.msra.mxu0 0.0
    %2037 = vmatprep.subr.mxu0 0.0
    %2038 = vmatpush1.msra.mxu0 0.0
    %2039 = vmatprep.subr.mxu0 0.0
    %2040 = vmatpush1.msra.mxu0 0.0
    %2041 = vmatprep.subr.mxu0 0.0
    %2042 = vmatpush1.msra.mxu0 0.0
    %2043 = vmatprep.subr.mxu0 0.0
    %2044 = vmatpush1.msra.mxu0 0.0
    %2045 = vmatprep.mubr.f32.mxu0 0.0
    %2046 = vmatmul.mubr.f32.gmra.mrb[0].mxu0 %v1795
    %v2047 = vpop.f32.mrb[0].mxu0
    %v2048 = vadd.f32 0.0, %v2047
    %v2049 = vpop.f32.mrb[0].mxu0
    %2050 = vdwg.mxu0
    %v2051 = vlaneseq
    %v2052 = vshrl.u32 %v2051, 7
    %v2053 = vsub.s32 0, %v2052
    %v2054 = vrot.slane %v524, %v2053
    %v2055 = vadd.f32 %v2054, %v2048
    %v2056 = vxor.u32 %v2055, 2147483648
    %v2057 = vmul.f32 %v2056, 1.442695
    %v2058 = vpow.pop %v2057
    %v2059 = vadd.f32 %v2058, 1.0
    %v2060 = vrcp.pop %v2059
    %v2061 = vmul.f32 1.0, %v2060
    %2062 = vmatprep.subr.mxu0 0.0
    %2063 = vmatpush1.msra.mxu0 %v49
    %2064 = vmatprep.subr.mxu0 0.0
    %2065 = vmatpush1.msra.mxu0 %v50
    %2066 = vmatprep.subr.mxu0 0.0
    %2067 = vmatpush1.msra.mxu0 %v51
    %2068 = vmatprep.subr.mxu0 0.0
    %2069 = vmatpush1.msra.mxu0 %v52
    %2070 = vmatprep.subr.mxu0 0.0
    %2071 = vmatpush1.msra.mxu0 0.0
    %2072 = vmatprep.subr.mxu0 0.0
    %2073 = vmatpush1.msra.mxu0 0.0
    %2074 = vmatprep.subr.mxu0 0.0
    %2075 = vmatpush1.msra.mxu0 0.0
    %2076 = vmatprep.subr.mxu0 0.0
    %2077 = vmatpush1.msra.mxu0 0.0
    %2078 = vmatprep.subr.mxu0 0.0
    %2079 = vmatpush1.msra.mxu0 0.0
    %2080 = vmatprep.subr.mxu0 0.0
    %2081 = vmatpush1.msra.mxu0 0.0
    %2082 = vmatprep.subr.mxu0 0.0
    %2083 = vmatpush1.msra.mxu0 0.0
    %2084 = vmatprep.subr.mxu0 0.0
    %2085 = vmatpush1.msra.mxu0 0.0
    %2086 = vmatprep.subr.mxu0 0.0
    %2087 = vmatpush1.msra.mxu0 0.0
    %2088 = vmatprep.subr.mxu0 0.0
    %2089 = vmatpush1.msra.mxu0 0.0
    %2090 = vmatprep.subr.mxu0 0.0
    %2091 = vmatpush1.msra.mxu0 0.0
    %2092 = vmatprep.subr.mxu0 0.0
    %2093 = vmatpush1.msra.mxu0 0.0
    %2094 = vmatprep.subr.mxu0 0.0
    %2095 = vmatpush1.msra.mxu0 0.0
    %2096 = vmatprep.subr.mxu0 0.0
    %2097 = vmatpush1.msra.mxu0 0.0
    %2098 = vmatprep.subr.mxu0 0.0
    %2099 = vmatpush1.msra.mxu0 0.0
    %2100 = vmatprep.subr.mxu0 0.0
    %2101 = vmatpush1.msra.mxu0 0.0
    %2102 = vmatprep.subr.mxu0 0.0
    %2103 = vmatpush1.msra.mxu0 0.0
    %2104 = vmatprep.subr.mxu0 0.0
    %2105 = vmatpush1.msra.mxu0 0.0
    %2106 = vmatprep.subr.mxu0 0.0
    %2107 = vmatpush1.msra.mxu0 0.0
    %2108 = vmatprep.subr.mxu0 0.0
    %2109 = vmatpush1.msra.mxu0 0.0
    %2110 = vmatprep.subr.mxu0 0.0
    %2111 = vmatpush1.msra.mxu0 0.0
    %2112 = vmatprep.subr.mxu0 0.0
    %2113 = vmatpush1.msra.mxu0 0.0
    %2114 = vmatprep.subr.mxu0 0.0
    %2115 = vmatpush1.msra.mxu0 0.0
    %2116 = vmatprep.subr.mxu0 0.0
    %2117 = vmatpush1.msra.mxu0 0.0
    %2118 = vmatprep.subr.mxu0 0.0
    %2119 = vmatpush1.msra.mxu0 0.0
    %2120 = vmatprep.subr.mxu0 0.0
    %2121 = vmatpush1.msra.mxu0 0.0
    %2122 = vmatprep.subr.mxu0 0.0
    %2123 = vmatpush1.msra.mxu0 0.0
    %2124 = vmatprep.subr.mxu0 0.0
    %2125 = vmatpush1.msra.mxu0 0.0
    %2126 = vmatprep.mubr.f32.mxu0 0.0
    %2127 = vmatmul.mubr.f32.gmra.mrb[0].mxu0 %v1795
    %v2128 = vpop.f32.mrb[0].mxu0
    %v2129 = vadd.f32 0.0, %v2128
    %v2130 = vpop.f32.mrb[0].mxu0
    %2131 = vdwg.mxu0
    %v2132 = vlaneseq
    %v2133 = vshrl.u32 %v2132, 7
    %v2134 = vsub.s32 0, %v2133
    %v2135 = vrot.slane %v594, %v2134
    %v2136 = vadd.f32 %v2135, %v2129
    %v2137 = vtanh.pop %v2136
    %2138 = vmatprep.subr.mxu0 0.0
    %2139 = vmatpush1.msra.mxu0 %v53
    %2140 = vmatprep.subr.mxu0 0.0
    %2141 = vmatpush1.msra.mxu0 %v54
    %2142 = vmatprep.subr.mxu0 0.0
    %2143 = vmatpush1.msra.mxu0 %v55
    %2144 = vmatprep.subr.mxu0 0.0
    %2145 = vmatpush1.msra.mxu0 %v56
    %2146 = vmatprep.subr.mxu0 0.0
    %2147 = vmatpush1.msra.mxu0 0.0
    %2148 = vmatprep.subr.mxu0 0.0
    %2149 = vmatpush1.msra.mxu0 0.0
    %2150 = vmatprep.subr.mxu0 0.0
    %2151 = vmatpush1.msra.mxu0 0.0
    %2152 = vmatprep.subr.mxu0 0.0
    %2153 = vmatpush1.msra.mxu0 0.0
    %2154 = vmatprep.subr.mxu0 0.0
    %2155 = vmatpush1.msra.mxu0 0.0
    %2156 = vmatprep.subr.mxu0 0.0
    %2157 = vmatpush1.msra.mxu0 0.0
    %2158 = vmatprep.subr.mxu0 0.0
    %2159 = vmatpush1.msra.mxu0 0.0
    %2160 = vmatprep.subr.mxu0 0.0
    %2161 = vmatpush1.msra.mxu0 0.0
    %2162 = vmatprep.subr.mxu0 0.0
    %2163 = vmatpush1.msra.mxu0 0.0
    %2164 = vmatprep.subr.mxu0 0.0
    %2165 = vmatpush1.msra.mxu0 0.0
    %2166 = vmatprep.subr.mxu0 0.0
    %2167 = vmatpush1.msra.mxu0 0.0
    %2168 = vmatprep.subr.mxu0 0.0
    %2169 = vmatpush1.msra.mxu0 0.0
    %2170 = vmatprep.subr.mxu0 0.0
    %2171 = vmatpush1.msra.mxu0 0.0
    %2172 = vmatprep.subr.mxu0 0.0
    %2173 = vmatpush1.msra.mxu0 0.0
    %2174 = vmatprep.subr.mxu0 0.0
    %2175 = vmatpush1.msra.mxu0 0.0
    %2176 = vmatprep.subr.mxu0 0.0
    %2177 = vmatpush1.msra.mxu0 0.0
    %2178 = vmatprep.subr.mxu0 0.0
    %2179 = vmatpush1.msra.mxu0 0.0
    %2180 = vmatprep.subr.mxu0 0.0
    %2181 = vmatpush1.msra.mxu0 0.0
    %2182 = vmatprep.subr.mxu0 0.0
    %2183 = vmatpush1.msra.mxu0 0.0
    %2184 = vmatprep.subr.mxu0 0.0
    %2185 = vmatpush1.msra.mxu0 0.0
    %2186 = vmatprep.subr.mxu0 0.0
    %2187 = vmatpush1.msra.mxu0 0.0
    %2188 = vmatprep.subr.mxu0 0.0
    %2189 = vmatpush1.msra.mxu0 0.0
    %2190 = vmatprep.subr.mxu0 0.0
    %2191 = vmatpush1.msra.mxu0 0.0
    %2192 = vmatprep.subr.mxu0 0.0
    %2193 = vmatpush1.msra.mxu0 0.0
    %2194 = vmatprep.subr.mxu0 0.0
    %2195 = vmatpush1.msra.mxu0 0.0
    %2196 = vmatprep.subr.mxu0 0.0
    %2197 = vmatpush1.msra.mxu0 0.0
    %2198 = vmatprep.subr.mxu0 0.0
    %2199 = vmatpush1.msra.mxu0 0.0
    %2200 = vmatprep.subr.mxu0 0.0
    %2201 = vmatpush1.msra.mxu0 0.0
    %2202 = vmatprep.mubr.f32.mxu0 0.0
    %2203 = vmatmul.mubr.f32.gmra.mrb[0].mxu0 %v1795
    %v2204 = vpop.f32.mrb[0].mxu0
    %v2205 = vadd.f32 0.0, %v2204
    %v2206 = vpop.f32.mrb[0].mxu0
    %2207 = vdwg.mxu0
    %v2208 = vlaneseq
    %v2209 = vshrl.u32 %v2208, 7
    %v2210 = vsub.s32 0, %v2209
    %v2211 = vrot.slane %v664, %v2210
    %v2212 = vadd.f32 %v2211, %v2205
    %v2213 = vxor.u32 %v2212, 2147483648
    %v2214 = vmul.f32 %v2213, 1.442695
    %v2215 = vpow.pop %v2214
    %v2216 = vadd.f32 %v2215, 1.0
    %v2217 = vrcp.pop %v2216
    %v2218 = vmul.f32 1.0, %v2217
    %v2219 = vmul.f32 %v2061, %v1791
    %v2220 = vmul.f32 %v1980, %v2137
    %v2221 = vadd.f32 %v2219, %v2220
    %v2222 = vtanh.pop %v2221
    %v2223 = vmul.f32 %v2218, %v2222
    %v2224 = vmul.f32 %v2223, %v993
    %v2225 = vsel %vm1073, %v2224, 0.0
    %2226 = vadd.xlane.f32.xlu0 %v2225
    %v2227 = vpop.xlane.xlu0 %2226
    %v2228 = vmul.f32 %v2223, %v1390
    %v2229 = vsel %vm1073, %v2228, 0.0
    %2230 = vadd.xlane.f32.xlu0 %v2229
    %v2231 = vpop.xlane.xlu0 %2230
    %v2232 = vmul.f32 %v2223, %v1793
    %v2233 = vsel %vm1073, %v2232, 0.0
    %2234 = vadd.xlane.f32.xlu0 %v2233
    %v2235 = vpop.xlane.xlu0 %2234
    %v2236 = vmul.f32 %v2223, %v2223
    %v2237 = vsel %vm1073, %v2236, 0.0
    %2238 = vadd.xlane.f32.xlu0 %v2237
    %v2239 = vpop.xlane.xlu0 %2238
    %v2240 = vmax.f32 %v2227, %v2231
    %v2241 = vmax.f32 %v2240, %v2235
    %v2242 = vmax.f32 %v2241, %v2239
    %v2243 = vsub.f32 %v2227, %v2242
    %v2244 = vmul.f32 %v2243, 1.442695
    %v2245 = vpow.pop %v2244
    %v2246 = vsub.f32 %v2231, %v2242
    %v2247 = vmul.f32 %v2246, 1.442695
    %v2248 = vpow.pop %v2247
    %v2249 = vsub.f32 %v2235, %v2242
    %v2250 = vmul.f32 %v2249, 1.442695
    %v2251 = vpow.pop %v2250
    %v2252 = vsub.f32 %v2239, %v2242
    %v2253 = vmul.f32 %v2252, 1.442695
    %v2254 = vpow.pop %v2253
    %v2255 = vadd.f32 %v2245, %v2248
    %v2256 = vadd.f32 %v2255, %v2251
    %v2257 = vadd.f32 %v2256, %v2254
    %v2258 = vmul.f32 %v2245, %v682
    %v2259 = vmul.f32 %v2248, %v1082
    %v2260 = vadd.f32 %v2258, %v2259
    %v2261 = vmul.f32 %v2251, %v1485
    %v2262 = vadd.f32 %v2260, %v2261
    %v2263 = vmul.f32 %v2254, %v1899
    %v2264 = vadd.f32 %v2262, %v2263
    %v2265 = vrcp.pop %v2257
    %v2266 = vmul.f32 %v2264, %v2265
    %2267 = vst [vmem:[%s3 + $0x6] sm:$0x3] %v2266
    // Predicated region
    $region22: #{neurallp_forward.1} parent=1 // pred_check
      _
    $region23: #{neurallp_forward.1} parent=1 // pred_check_branch
      %2269 = sbr.rel (0) target = $region25
    $region24: #{neurallp_forward.1} parent=1 // pred_region
      _
    $region25: #{neurallp_forward.1} parent=1 // pred_fallthru
      _
    // Predicated region
    $region26: #{neurallp_forward.1} parent=1 // pred_check
      _
    $region27: #{neurallp_forward.1} parent=1 // pred_check_branch
      %2271 = sbr.rel (0) target = $region29
    $region28: #{neurallp_forward.1} parent=1 // pred_region
      _
    $region29: #{neurallp_forward.1} parent=1 // pred_fallthru
      _
    %2272 = vsyncpa [#allocation3], 1
    %2273 = vsyncpa [#allocation4], 1

</llo_original>
